<compile_context>
chip_gen: v7x
topology: tpu7x:2x2x1
jax: 0.10.0
libtpu: 0.0.40
codegen_flags: <defaults>
</compile_context>

<pallas_src>
import math

import jax
import jax.numpy as jnp
from jax import lax
from jax.experimental import pallas as pl
from jax.experimental.pallas import tpu as pltpu


MXU_DTYPE = jnp.float32  # use jnp.bfloat16 on v6e/v7x for matmul operands (f32 accumulate kept)


def _round_up(n, m):
    return ((n + m - 1) // m) * m


# ---------------------------------------------------------------------------
# Pure-JAX reference (mirrors the PyTorch forward exactly — un-fused,
# column-major (features, batch) layout) used only for verification.
# ---------------------------------------------------------------------------
def _hard_sigm(a, x):
    return jnp.clip((a * x + 1.0) * 0.5, 0.0, 1.0)


def _scd_cell_ref(c, h_bottom, h, h_top, z, z_bottom,
                  U11, U21, W01, bias, H, a, last_layer):
    s_recur = (1.0 - z) * jnp.dot(U11, h)
    if last_layer:
        s_topdown = jnp.zeros_like(s_recur)
    else:
        s_topdown = z * jnp.dot(U21, h_top)
    s_bottomup = z_bottom * jnp.dot(W01, h_bottom)
    f_s = s_recur + s_topdown + s_bottomup + bias
    f = jax.nn.sigmoid(f_s[0:H, :])
    i = jax.nn.sigmoid(f_s[H:2 * H, :])
    o = jax.nn.sigmoid(f_s[2 * H:3 * H, :])
    g = jnp.tanh(f_s[3 * H:4 * H, :])
    z_hat = _hard_sigm(a, f_s[4 * H:4 * H + 1, :])
    c_new = (z * (i * g)
             + (1.0 - z) * (1.0 - z_bottom) * c
             + (1.0 - z) * z_bottom * (f * c + i * g))
    tc = jnp.tanh(c_new)
    h_new = (z * o * tc
             + (1.0 - z) * (1.0 - z_bottom) * h
             + (1.0 - z) * z_bottom * o * tc)
    return h_new, c_new, z_hat


def reference_forward(x, params, a):
    B, T, D = x.shape
    H1 = params["u11_1"].shape[1]
    H2 = params["u11_2"].shape[1]
    h1 = jnp.zeros((H1, B), jnp.float32)
    c1 = jnp.zeros((H1, B), jnp.float32)
    z1 = jnp.zeros((1, B), jnp.float32)
    h2 = jnp.zeros((H2, B), jnp.float32)
    c2 = jnp.zeros((H2, B), jnp.float32)
    z2 = jnp.zeros((1, B), jnp.float32)
    z_one = jnp.ones((1, B), jnp.float32)
    outs = []
    for t in range(T):
        xb = x[:, t, :].T  # (D, B)
        h1, c1, z1 = _scd_cell_ref(c1, xb, h1, h2, z1, z_one,
                                   params["u11_1"], params["u21_1"], params["w01_1"],
                                   params["b1"], H1, a, last_layer=False)
        h2, c2, z2 = _scd_cell_ref(c2, h1, h2, None, z2, z1,
                                   params["u11_2"], None, params["w01_2"],
                                   params["b2"], H2, a, last_layer=True)
        outs.append((h2 * z2).T)  # (B, H2)
    return jnp.stack(outs, axis=1)  # (B, T, H2)


# ---------------------------------------------------------------------------
# Pallas kernel: whole sequence in one invocation, one fused matmul per layer.
# ---------------------------------------------------------------------------
def _make_kernel(T, B, D, H1, H2, K1, K2, a):
    K1_raw = H1 + H2 + D + 1   # (1-z1)*h1 | z1*h2 | x_t | bias-ones
    K2_raw = H2 + H1 + 1       # (1-z2)*h2 | z1*h1 | bias-ones

    if T <= 8:
        unroll = T
    else:
        unroll = max(u for u in (4, 2, 1) if T % u == 0)

    def kernel(x_ref,     # (T, B, D)
               w1_ref,    # (K1, 4*H1+1)   [U11_1^T ; U21_1^T ; W01_1^T ; b1^T ; 0-pad]
               w2_ref,    # (K2, 4*H2+1)   [U11_2^T ; W01_2^T ; b2^T ; 0-pad]
               out_ref):  # (T, B, H2)     h_t2 * z_t2 per timestep

        # Loop-invariant operands, hoisted once.
        w1 = w1_ref[...].astype(MXU_DTYPE)
        w2 = w2_ref[...].astype(MXU_DTYPE)
        ones_col = jnp.ones((B, 1), jnp.float32)
        pad1 = jnp.zeros((B, K1 - K1_raw), jnp.float32) if K1 > K1_raw else None
        pad2 = jnp.zeros((B, K2 - K2_raw), jnp.float32) if K2 > K2_raw else None

        def step(t, carry):
            h1, c1, z1, h2, c2, z2 = carry
            x_t = x_ref[t]                                     # (B, D)

            # ---------- layer 1 (z_bottom == 1, has top-down from prev h2) ----------
            parts1 = [(1.0 - z1) * h1, z1 * h2, x_t, ones_col]
            if pad1 is not None:
                parts1.append(pad1)
            in1 = jnp.concatenate(parts1, axis=1)              # (B, K1)
            fs1 = jnp.dot(in1.astype(MXU_DTYPE), w1,
                          preferred_element_type=jnp.float32)  # (B, 4H1+1)
            f1 = jax.nn.sigmoid(fs1[:, 0:H1])
            i1 = jax.nn.sigmoid(fs1[:, H1:2 * H1])
            o1 = jax.nn.sigmoid(fs1[:, 2 * H1:3 * H1])
            g1 = jnp.tanh(fs1[:, 3 * H1:4 * H1])
            z1n = jnp.clip((a * fs1[:, 4 * H1:4 * H1 + 1] + 1.0) * 0.5, 0.0, 1.0)
            ig1 = i1 * g1
            c1n = z1 * ig1 + (1.0 - z1) * (f1 * c1 + ig1)      # z_bottom == 1 specialization
            h1n = o1 * jnp.tanh(c1n)

            # ---------- layer 2 (last layer: no top-down, z_bottom = z1n) ----------
            parts2 = [(1.0 - z2) * h2, z1n * h1n, ones_col]
            if pad2 is not None:
                parts2.append(pad2)
            in2 = jnp.concatenate(parts2, axis=1)              # (B, K2)
            fs2 = jnp.dot(in2.astype(MXU_DTYPE), w2,
                          preferred_element_type=jnp.float32)  # (B, 4H2+1)
            f2 = jax.nn.sigmoid(fs2[:, 0:H2])
            i2 = jax.nn.sigmoid(fs2[:, H2:2 * H2])
            o2 = jax.nn.sigmoid(fs2[:, 2 * H2:3 * H2])
            g2 = jnp.tanh(fs2[:, 3 * H2:4 * H2])
            z2n = jnp.clip((a * fs2[:, 4 * H2:4 * H2 + 1] + 1.0) * 0.5, 0.0, 1.0)
            ig2 = i2 * g2
            nz2 = 1.0 - z2
            c2n = z2 * ig2 + nz2 * (1.0 - z1n) * c2 + nz2 * z1n * (f2 * c2 + ig2)
            otc = o2 * jnp.tanh(c2n)
            h2n = z2 * otc + nz2 * (1.0 - z1n) * h2 + nz2 * z1n * otc

            # result at timestep t (before dropout): h_t2 * z_t2, stored to resident VMEM out
            out_ref[t] = h2n * z2n                             # (B, H2)
            return (h1n, c1n, z1n, h2n, c2n, z2n)

        # hidden == None  ->  zero-init state
        init = (jnp.zeros((B, H1), jnp.float32),
                jnp.zeros((B, H1), jnp.float32),
                jnp.zeros((B, 1), jnp.float32),
                jnp.zeros((B, H2), jnp.float32),
                jnp.zeros((B, H2), jnp.float32),
                jnp.zeros((B, 1), jnp.float32))

        lax.fori_loop(0, T, step, init, unroll=unroll)

    return kernel


def subseq_aware_lstm_forward(x, params, a):
    """x: (B, T, D) float32.  Returns (B, T, H2) = h_2 * z_2 (dropout identity / eval mode)."""
    B, T, D = x.shape
    H1 = params["u11_1"].shape[1]
    H2 = params["u11_2"].shape[1]
    N1, N2 = 4 * H1 + 1, 4 * H2 + 1

    K1_raw = H1 + H2 + D + 1
    K2_raw = H2 + H1 + 1
    K1 = _round_up(K1_raw, 8)
    K2 = _round_up(K2_raw, 8)

    f32 = lambda v: jnp.asarray(v, jnp.float32)

    # Fused (transposed) weights: one matmul per layer, bias folded in via a ones column,
    # contraction dim zero-padded to a multiple of 8.
    w1 = jnp.concatenate([
        f32(params["u11_1"]).T,                 # (H1, N1)  recurrent
        f32(params["u21_1"]).T,                 # (H2, N1)  top-down
        f32(params["w01_1"]).T,                 # (D,  N1)  bottom-up
        f32(params["b1"]).T,                    # (1,  N1)  bias
        jnp.zeros((K1 - K1_raw, N1), jnp.float32),
    ], axis=0).astype(MXU_DTYPE)                # (K1, N1)

    w2 = jnp.concatenate([
        f32(params["u11_2"]).T,                 # (H2, N2)  recurrent
        f32(params["w01_2"]).T,                 # (H1, N2)  bottom-up
        f32(params["b2"]).T,                    # (1,  N2)  bias
        jnp.zeros((K2 - K2_raw, N2), jnp.float32),
    ], axis=0).astype(MXU_DTYPE)                # (K2, N2)

    x_tbd = jnp.transpose(f32(x), (1, 0, 2))    # (T, B, D), row-major (batch, features) per step

    kernel = _make_kernel(T, B, D, H1, H2, K1, K2, float(a))

    vmem = pltpu.MemorySpace.VMEM
    out = pl.pallas_call(
        kernel,
        out_shape=jax.ShapeDtypeStruct((T, B, H2), jnp.float32),
        in_specs=[
            pl.BlockSpec(memory_space=vmem),    # x  (T, B, D)  — whole sequence resident
            pl.BlockSpec(memory_space=vmem),    # fused layer-1 weights
            pl.BlockSpec(memory_space=vmem),    # fused layer-2 weights
        ],
        out_specs=pl.BlockSpec(memory_space=vmem),
    )(x_tbd, w1, w2)

    # result = self.drop(h_2 * z_2)
    # TODO(synk): nn.Dropout(p=0.5) is stochastic in train mode; implemented as identity (eval mode).
    return jnp.transpose(out, (1, 0, 2))        # (B, T, H2)


# ---------------------------------------------------------------------------
# Deterministic parameter init (mirrors SCD_cell.reset_parameters: U(-stdv, stdv))
# ---------------------------------------------------------------------------
def init_params(key, input_size, size_list):
    H1, H2 = size_list
    ks = jax.random.split(key, 7)
    std1 = 1.0 / math.sqrt(H1)
    std2 = 1.0 / math.sqrt(H2)
    u = lambda k, shape, s: jax.random.uniform(k, shape, jnp.float32, -s, s)
    return {
        # cell_1: bottom=input_size, hidden=H1, top=H2
        "u11_1": u(ks[0], (4 * H1 + 1, H1), std1),
        "u21_1": u(ks[1], (4 * H1 + 1, H2), std1),
        "w01_1": u(ks[2], (4 * H1 + 1, input_size), std1),
        "b1":    u(ks[3], (4 * H1 + 1, 1), std1),
        # cell_2: bottom=H1, hidden=H2, last layer (no U_21)
        "u11_2": u(ks[4], (4 * H2 + 1, H2), std2),
        "w01_2": u(ks[5], (4 * H2 + 1, H1), std2),
        "b2":    u(ks[6], (4 * H2 + 1, 1), std2),
    }


if __name__ == "__main__":
    a = 1.0
    input_size = 8
    size_list = [32, 16]      # [H1, H2]
    batch, time_steps = 4, 6

    key = jax.random.PRNGKey(0)
    k_x, k_p = jax.random.split(key)
    x = jax.random.normal(k_x, (batch, time_steps, input_size), jnp.float32)
    params = init_params(k_p, input_size, size_list)

    out = jax.block_until_ready(subseq_aware_lstm_forward(x, params, a))
    ref = jax.block_until_ready(reference_forward(x, params, a))

    assert out.shape == (batch, time_steps, size_list[1]), out.shape
    max_err = float(jnp.max(jnp.abs(out - ref)))
    assert jnp.allclose(out, ref, atol=2e-3, rtol=2e-3), max_err
    print("KERNEL_OK")
</pallas_src>

<mosaic_0001>
module attributes {stable_mosaic.version = 11 : i64} {
  func.func @kernel(%arg0: memref<6x4x8xf32, #tpu.memory_space<vmem>>, %arg1: memref<64x129xf32, #tpu.memory_space<vmem>>, %arg2: memref<56x65xf32, #tpu.memory_space<vmem>>, %arg3: memref<6x4x16xf32, #tpu.memory_space<vmem>>) attributes {dimension_semantics = [], scalar_prefetch = 0 : i64, scratch_operands = 0 : i64, tpu.core_type = #tpu.core_type<tc>} {
    %c0 = arith.constant 0 : index
    %c0_0 = arith.constant 0 : index
    %0 = vector.load %arg1[%c0, %c0_0] : memref<64x129xf32, #tpu.memory_space<vmem>>, vector<64x129xf32>
    %c0_1 = arith.constant 0 : index
    %c0_2 = arith.constant 0 : index
    %1 = vector.load %arg2[%c0_1, %c0_2] : memref<56x65xf32, #tpu.memory_space<vmem>>, vector<56x65xf32>
    %cst = arith.constant 1.000000e+00 : f32
    %2 = vector.broadcast %cst : f32 to vector<4x1xf32>
    %cst_3 = arith.constant 0.000000e+00 : f32
    %3 = vector.broadcast %cst_3 : f32 to vector<4x7xf32>
    %cst_4 = arith.constant 0.000000e+00 : f32
    %4 = vector.broadcast %cst_4 : f32 to vector<4x7xf32>
    %cst_5 = arith.constant 0.000000e+00 : f32
    %5 = vector.broadcast %cst_5 : f32 to vector<4x32xf32>
    %cst_6 = arith.constant 0.000000e+00 : f32
    %6 = vector.broadcast %cst_6 : f32 to vector<4x32xf32>
    %cst_7 = arith.constant 0.000000e+00 : f32
    %7 = vector.broadcast %cst_7 : f32 to vector<4x1xf32>
    %cst_8 = arith.constant 0.000000e+00 : f32
    %8 = vector.broadcast %cst_8 : f32 to vector<4x16xf32>
    %cst_9 = arith.constant 0.000000e+00 : f32
    %9 = vector.broadcast %cst_9 : f32 to vector<4x16xf32>
    %cst_10 = arith.constant 0.000000e+00 : f32
    %10 = vector.broadcast %cst_10 : f32 to vector<4x1xf32>
    %c0_i32 = arith.constant 0 : i32
    %11 = arith.index_cast %c0_i32 : i32 to index
    %c0_11 = arith.constant 0 : index
    %c0_12 = arith.constant 0 : index
    %12 = vector.load %arg0[%11, %c0_11, %c0_12] : memref<6x4x8xf32, #tpu.memory_space<vmem>>, vector<1x4x8xf32>
    %13 = vector.shape_cast %12 : vector<1x4x8xf32> to vector<4x8xf32>
    %cst_13 = arith.constant 1.000000e+00 : f32
    %14 = vector.broadcast %cst_13 : f32 to vector<4x1xf32>
    %15 = arith.subf %14, %7 : vector<4x1xf32>
    %16 = vector.broadcast %15 : vector<4x1xf32> to vector<4x32xf32>
    %17 = arith.mulf %16, %5 : vector<4x32xf32>
    %18 = vector.broadcast %7 : vector<4x1xf32> to vector<4x16xf32>
    %19 = arith.mulf %18, %8 : vector<4x16xf32>
    %20 = tpu.concatenate %17, %19, %13, %2, %3 in 1 : vector<4x32xf32>, vector<4x16xf32>, vector<4x8xf32>, vector<4x1xf32>, vector<4x7xf32> -> vector<4x64xf32>
    %cst_14 = arith.constant dense<0.000000e+00> : vector<4x129xf32>
    %21 = tpu.matmul %20, %0, %cst_14 {dimension_numbers = #tpu.dot_dimension_numbers<[1], [0], [0], [1], [0, 0, 1, 1], [], []>} : vector<4x64xf32>, vector<64x129xf32>, vector<4x129xf32> -> vector<4x129xf32>
    %22 = vector.extract_strided_slice %21 {offsets = [0, 0], sizes = [4, 32], strides = [1, 1]} : vector<4x129xf32> to vector<4x32xf32>
    %23 = arith.negf %22 : vector<4x32xf32>
    %24 = math.exp %23 : vector<4x32xf32>
    %cst_15 = arith.constant 1.000000e+00 : f32
    %25 = vector.broadcast %cst_15 : f32 to vector<4x32xf32>
    %26 = arith.addf %25, %24 : vector<4x32xf32>
    %27 = arith.divf %25, %26 : vector<4x32xf32>
    %28 = vector.extract_strided_slice %21 {offsets = [0, 32], sizes = [4, 32], strides = [1, 1]} : vector<4x129xf32> to vector<4x32xf32>
    %29 = arith.negf %28 : vector<4x32xf32>
    %30 = math.exp %29 : vector<4x32xf32>
    %cst_16 = arith.constant 1.000000e+00 : f32
    %31 = vector.broadcast %cst_16 : f32 to vector<4x32xf32>
    %32 = arith.addf %31, %30 : vector<4x32xf32>
    %33 = arith.divf %31, %32 : vector<4x32xf32>
    %34 = vector.extract_strided_slice %21 {offsets = [0, 64], sizes = [4, 32], strides = [1, 1]} : vector<4x129xf32> to vector<4x32xf32>
    %35 = arith.negf %34 : vector<4x32xf32>
    %36 = math.exp %35 : vector<4x32xf32>
    %cst_17 = arith.constant 1.000000e+00 : f32
    %37 = vector.broadcast %cst_17 : f32 to vector<4x32xf32>
    %38 = arith.addf %37, %36 : vector<4x32xf32>
    %39 = arith.divf %37, %38 : vector<4x32xf32>
    %40 = vector.extract_strided_slice %21 {offsets = [0, 96], sizes = [4, 32], strides = [1, 1]} : vector<4x129xf32> to vector<4x32xf32>
    %41 = math.tanh %40 : vector<4x32xf32>
    %42 = vector.extract_strided_slice %21 {offsets = [0, 128], sizes = [4, 1], strides = [1, 1]} : vector<4x129xf32> to vector<4x1xf32>
    %cst_18 = arith.constant 1.000000e+00 : f32
    %43 = vector.broadcast %cst_18 : f32 to vector<4x1xf32>
    %44 = arith.mulf %43, %42 : vector<4x1xf32>
    %cst_19 = arith.constant 1.000000e+00 : f32
    %45 = vector.broadcast %cst_19 : f32 to vector<4x1xf32>
    %46 = arith.addf %44, %45 : vector<4x1xf32>
    %cst_20 = arith.constant 5.000000e-01 : f32
    %47 = vector.broadcast %cst_20 : f32 to vector<4x1xf32>
    %48 = arith.mulf %46, %47 : vector<4x1xf32>
    %cst_21 = arith.constant 0.000000e+00 : f32
    %cst_22 = arith.constant 1.000000e+00 : f32
    %49 = vector.broadcast %cst_21 : f32 to vector<4x1xf32>
    %50 = arith.maximumf %49, %48 : vector<4x1xf32>
    %51 = vector.broadcast %cst_22 : f32 to vector<4x1xf32>
    %52 = arith.minimumf %51, %50 : vector<4x1xf32>
    %53 = arith.mulf %33, %41 : vector<4x32xf32>
    %54 = vector.broadcast %7 : vector<4x1xf32> to vector<4x32xf32>
    %55 = arith.mulf %54, %53 : vector<4x32xf32>
    %cst_23 = arith.constant 1.000000e+00 : f32
    %56 = vector.broadcast %cst_23 : f32 to vector<4x1xf32>
    %57 = arith.subf %56, %7 : vector<4x1xf32>
    %58 = arith.mulf %27, %6 : vector<4x32xf32>
    %59 = arith.addf %58, %53 : vector<4x32xf32>
    %60 = vector.broadcast %57 : vector<4x1xf32> to vector<4x32xf32>
    %61 = arith.mulf %60, %59 : vector<4x32xf32>
    %62 = arith.addf %55, %61 : vector<4x32xf32>
    %63 = math.tanh %62 : vector<4x32xf32>
    %64 = arith.mulf %39, %63 : vector<4x32xf32>
    %cst_24 = arith.constant 1.000000e+00 : f32
    %65 = vector.broadcast %cst_24 : f32 to vector<4x1xf32>
    %66 = arith.subf %65, %10 : vector<4x1xf32>
    %67 = vector.broadcast %66 : vector<4x1xf32> to vector<4x16xf32>
    %68 = arith.mulf %67, %8 : vector<4x16xf32>
    %69 = vector.broadcast %52 : vector<4x1xf32> to vector<4x32xf32>
    %70 = arith.mulf %69, %64 : vector<4x32xf32>
    %71 = tpu.concatenate %68, %70, %2, %4 in 1 : vector<4x16xf32>, vector<4x32xf32>, vector<4x1xf32>, vector<4x7xf32> -> vector<4x56xf32>
    %cst_25 = arith.constant dense<0.000000e+00> : vector<4x65xf32>
    %72 = tpu.matmul %71, %1, %cst_25 {dimension_numbers = #tpu.dot_dimension_numbers<[1], [0], [0], [1], [0, 0, 1, 1], [], []>} : vector<4x56xf32>, vector<56x65xf32>, vector<4x65xf32> -> vector<4x65xf32>
    %73 = vector.extract_strided_slice %72 {offsets = [0, 0], sizes = [4, 16], strides = [1, 1]} : vector<4x65xf32> to vector<4x16xf32>
    %74 = arith.negf %73 : vector<4x16xf32>
    %75 = math.exp %74 : vector<4x16xf32>
    %cst_26 = arith.constant 1.000000e+00 : f32
    %76 = vector.broadcast %cst_26 : f32 to vector<4x16xf32>
    %77 = arith.addf %76, %75 : vector<4x16xf32>
    %78 = arith.divf %76, %77 : vector<4x16xf32>
    %79 = vector.extract_strided_slice %72 {offsets = [0, 16], sizes = [4, 16], strides = [1, 1]} : vector<4x65xf32> to vector<4x16xf32>
    %80 = arith.negf %79 : vector<4x16xf32>
    %81 = math.exp %80 : vector<4x16xf32>
    %cst_27 = arith.constant 1.000000e+00 : f32
    %82 = vector.broadcast %cst_27 : f32 to vector<4x16xf32>
    %83 = arith.addf %82, %81 : vector<4x16xf32>
    %84 = arith.divf %82, %83 : vector<4x16xf32>
    %85 = vector.extract_strided_slice %72 {offsets = [0, 32], sizes = [4, 16], strides = [1, 1]} : vector<4x65xf32> to vector<4x16xf32>
    %86 = arith.negf %85 : vector<4x16xf32>
    %87 = math.exp %86 : vector<4x16xf32>
    %cst_28 = arith.constant 1.000000e+00 : f32
    %88 = vector.broadcast %cst_28 : f32 to vector<4x16xf32>
    %89 = arith.addf %88, %87 : vector<4x16xf32>
    %90 = arith.divf %88, %89 : vector<4x16xf32>
    %91 = vector.extract_strided_slice %72 {offsets = [0, 48], sizes = [4, 16], strides = [1, 1]} : vector<4x65xf32> to vector<4x16xf32>
    %92 = math.tanh %91 : vector<4x16xf32>
    %93 = vector.extract_strided_slice %72 {offsets = [0, 64], sizes = [4, 1], strides = [1, 1]} : vector<4x65xf32> to vector<4x1xf32>
    %cst_29 = arith.constant 1.000000e+00 : f32
    %94 = vector.broadcast %cst_29 : f32 to vector<4x1xf32>
    %95 = arith.mulf %94, %93 : vector<4x1xf32>
    %cst_30 = arith.constant 1.000000e+00 : f32
    %96 = vector.broadcast %cst_30 : f32 to vector<4x1xf32>
    %97 = arith.addf %95, %96 : vector<4x1xf32>
    %cst_31 = arith.constant 5.000000e-01 : f32
    %98 = vector.broadcast %cst_31 : f32 to vector<4x1xf32>
    %99 = arith.mulf %97, %98 : vector<4x1xf32>
    %cst_32 = arith.constant 0.000000e+00 : f32
    %cst_33 = arith.constant 1.000000e+00 : f32
    %100 = vector.broadcast %cst_32 : f32 to vector<4x1xf32>
    %101 = arith.maximumf %100, %99 : vector<4x1xf32>
    %102 = vector.broadcast %cst_33 : f32 to vector<4x1xf32>
    %103 = arith.minimumf %102, %101 : vector<4x1xf32>
    %104 = arith.mulf %84, %92 : vector<4x16xf32>
    %cst_34 = arith.constant 1.000000e+00 : f32
    %105 = vector.broadcast %cst_34 : f32 to vector<4x1xf32>
    %106 = arith.subf %105, %10 : vector<4x1xf32>
    %107 = vector.broadcast %10 : vector<4x1xf32> to vector<4x16xf32>
    %108 = arith.mulf %107, %104 : vector<4x16xf32>
    %cst_35 = arith.constant 1.000000e+00 : f32
    %109 = vector.broadcast %cst_35 : f32 to vector<4x1xf32>
    %110 = arith.subf %109, %52 : vector<4x1xf32>
    %111 = arith.mulf %106, %110 : vector<4x1xf32>
    %112 = vector.broadcast %111 : vector<4x1xf32> to vector<4x16xf32>
    %113 = arith.mulf %112, %9 : vector<4x16xf32>
    %114 = arith.addf %108, %113 : vector<4x16xf32>
    %115 = arith.mulf %106, %52 : vector<4x1xf32>
    %116 = arith.mulf %78, %9 : vector<4x16xf32>
    %117 = arith.addf %116, %104 : vector<4x16xf32>
    %118 = vector.broadcast %115 : vector<4x1xf32> to vector<4x16xf32>
    %119 = arith.mulf %118, %117 : vector<4x16xf32>
    %120 = arith.addf %114, %119 : vector<4x16xf32>
    %121 = math.tanh %120 : vector<4x16xf32>
    %122 = arith.mulf %90, %121 : vector<4x16xf32>
    %123 = vector.broadcast %10 : vector<4x1xf32> to vector<4x16xf32>
    %124 = arith.mulf %123, %122 : vector<4x16xf32>
    %cst_36 = arith.constant 1.000000e+00 : f32
    %125 = vector.broadcast %cst_36 : f32 to vector<4x1xf32>
    %126 = arith.subf %125, %52 : vector<4x1xf32>
    %127 = arith.mulf %106, %126 : vector<4x1xf32>
    %128 = vector.broadcast %127 : vector<4x1xf32> to vector<4x16xf32>
    %129 = arith.mulf %128, %8 : vector<4x16xf32>
    %130 = arith.addf %124, %129 : vector<4x16xf32>
    %131 = arith.mulf %106, %52 : vector<4x1xf32>
    %132 = vector.broadcast %131 : vector<4x1xf32> to vector<4x16xf32>
    %133 = arith.mulf %132, %122 : vector<4x16xf32>
    %134 = arith.addf %130, %133 : vector<4x16xf32>
    %135 = vector.broadcast %103 : vector<4x1xf32> to vector<4x16xf32>
    %136 = arith.mulf %134, %135 : vector<4x16xf32>
    %137 = arith.index_cast %c0_i32 : i32 to index
    %c0_37 = arith.constant 0 : index
    %c0_38 = arith.constant 0 : index
    %138 = vector.load %arg3[%137, %c0_37, %c0_38] : memref<6x4x16xf32, #tpu.memory_space<vmem>>, vector<1x4x16xf32>
    %139 = vector.shape_cast %138 : vector<1x4x16xf32> to vector<4x16xf32>
    %140 = vector.shape_cast %136 : vector<4x16xf32> to vector<1x4x16xf32>
    tpu.vector_store %arg3[%137, %c0_37, %c0_38], %140 {strides = array<i32>} : memref<6x4x16xf32, #tpu.memory_space<vmem>>, vector<1x4x16xf32>,
    %c1_i32 = arith.constant 1 : i32
    %141 = arith.index_cast %c1_i32 : i32 to index
    %c0_39 = arith.constant 0 : index
    %c0_40 = arith.constant 0 : index
    %142 = vector.load %arg0[%141, %c0_39, %c0_40] : memref<6x4x8xf32, #tpu.memory_space<vmem>>, vector<1x4x8xf32>
    %143 = vector.shape_cast %142 : vector<1x4x8xf32> to vector<4x8xf32>
    %cst_41 = arith.constant 1.000000e+00 : f32
    %144 = vector.broadcast %cst_41 : f32 to vector<4x1xf32>
    %145 = arith.subf %144, %52 : vector<4x1xf32>
    %146 = vector.broadcast %145 : vector<4x1xf32> to vector<4x32xf32>
    %147 = arith.mulf %146, %64 : vector<4x32xf32>
    %148 = vector.broadcast %52 : vector<4x1xf32> to vector<4x16xf32>
    %149 = arith.mulf %148, %134 : vector<4x16xf32>
    %150 = tpu.concatenate %147, %149, %143, %2, %3 in 1 : vector<4x32xf32>, vector<4x16xf32>, vector<4x8xf32>, vector<4x1xf32>, vector<4x7xf32> -> vector<4x64xf32>
    %cst_42 = arith.constant dense<0.000000e+00> : vector<4x129xf32>
    %151 = tpu.matmul %150, %0, %cst_42 {dimension_numbers = #tpu.dot_dimension_numbers<[1], [0], [0], [1], [0, 0, 1, 1], [], []>} : vector<4x64xf32>, vector<64x129xf32>, vector<4x129xf32> -> vector<4x129xf32>
    %152 = vector.extract_strided_slice %151 {offsets = [0, 0], sizes = [4, 32], strides = [1, 1]} : vector<4x129xf32> to vector<4x32xf32>
    %153 = arith.negf %152 : vector<4x32xf32>
    %154 = math.exp %153 : vector<4x32xf32>
    %cst_43 = arith.constant 1.000000e+00 : f32
    %155 = vector.broadcast %cst_43 : f32 to vector<4x32xf32>
    %156 = arith.addf %155, %154 : vector<4x32xf32>
    %157 = arith.divf %155, %156 : vector<4x32xf32>
    %158 = vector.extract_strided_slice %151 {offsets = [0, 32], sizes = [4, 32], strides = [1, 1]} : vector<4x129xf32> to vector<4x32xf32>
    %159 = arith.negf %158 : vector<4x32xf32>
    %160 = math.exp %159 : vector<4x32xf32>
    %cst_44 = arith.constant 1.000000e+00 : f32
    %161 = vector.broadcast %cst_44 : f32 to vector<4x32xf32>
    %162 = arith.addf %161, %160 : vector<4x32xf32>
    %163 = arith.divf %161, %162 : vector<4x32xf32>
    %164 = vector.extract_strided_slice %151 {offsets = [0, 64], sizes = [4, 32], strides = [1, 1]} : vector<4x129xf32> to vector<4x32xf32>
    %165 = arith.negf %164 : vector<4x32xf32>
    %166 = math.exp %165 : vector<4x32xf32>
    %cst_45 = arith.constant 1.000000e+00 : f32
    %167 = vector.broadcast %cst_45 : f32 to vector<4x32xf32>
    %168 = arith.addf %167, %166 : vector<4x32xf32>
    %169 = arith.divf %167, %168 : vector<4x32xf32>
    %170 = vector.extract_strided_slice %151 {offsets = [0, 96], sizes = [4, 32], strides = [1, 1]} : vector<4x129xf32> to vector<4x32xf32>
    %171 = math.tanh %170 : vector<4x32xf32>
    %172 = vector.extract_strided_slice %151 {offsets = [0, 128], sizes = [4, 1], strides = [1, 1]} : vector<4x129xf32> to vector<4x1xf32>
    %cst_46 = arith.constant 1.000000e+00 : f32
    %173 = vector.broadcast %cst_46 : f32 to vector<4x1xf32>
    %174 = arith.mulf %173, %172 : vector<4x1xf32>
    %cst_47 = arith.constant 1.000000e+00 : f32
    %175 = vector.broadcast %cst_47 : f32 to vector<4x1xf32>
    %176 = arith.addf %174, %175 : vector<4x1xf32>
    %cst_48 = arith.constant 5.000000e-01 : f32
    %177 = vector.broadcast %cst_48 : f32 to vector<4x1xf32>
    %178 = arith.mulf %176, %177 : vector<4x1xf32>
    %cst_49 = arith.constant 0.000000e+00 : f32
    %cst_50 = arith.constant 1.000000e+00 : f32
    %179 = vector.broadcast %cst_49 : f32 to vector<4x1xf32>
    %180 = arith.maximumf %179, %178 : vector<4x1xf32>
    %181 = vector.broadcast %cst_50 : f32 to vector<4x1xf32>
    %182 = arith.minimumf %181, %180 : vector<4x1xf32>
    %183 = arith.mulf %163, %171 : vector<4x32xf32>
    %184 = vector.broadcast %52 : vector<4x1xf32> to vector<4x32xf32>
    %185 = arith.mulf %184, %183 : vector<4x32xf32>
    %cst_51 = arith.constant 1.000000e+00 : f32
    %186 = vector.broadcast %cst_51 : f32 to vector<4x1xf32>
    %187 = arith.subf %186, %52 : vector<4x1xf32>
    %188 = arith.mulf %157, %62 : vector<4x32xf32>
    %189 = arith.addf %188, %183 : vector<4x32xf32>
    %190 = vector.broadcast %187 : vector<4x1xf32> to vector<4x32xf32>
    %191 = arith.mulf %190, %189 : vector<4x32xf32>
    %192 = arith.addf %185, %191 : vector<4x32xf32>
    %193 = math.tanh %192 : vector<4x32xf32>
    %194 = arith.mulf %169, %193 : vector<4x32xf32>
    %cst_52 = arith.constant 1.000000e+00 : f32
    %195 = vector.broadcast %cst_52 : f32 to vector<4x1xf32>
    %196 = arith.subf %195, %103 : vector<4x1xf32>
    %197 = vector.broadcast %196 : vector<4x1xf32> to vector<4x16xf32>
    %198 = arith.mulf %197, %134 : vector<4x16xf32>
    %199 = vector.broadcast %182 : vector<4x1xf32> to vector<4x32xf32>
    %200 = arith.mulf %199, %194 : vector<4x32xf32>
    %201 = tpu.concatenate %198, %200, %2, %4 in 1 : vector<4x16xf32>, vector<4x32xf32>, vector<4x1xf32>, vector<4x7xf32> -> vector<4x56xf32>
    %cst_53 = arith.constant dense<0.000000e+00> : vector<4x65xf32>
    %202 = tpu.matmul %201, %1, %cst_53 {dimension_numbers = #tpu.dot_dimension_numbers<[1], [0], [0], [1], [0, 0, 1, 1], [], []>} : vector<4x56xf32>, vector<56x65xf32>, vector<4x65xf32> -> vector<4x65xf32>
    %203 = vector.extract_strided_slice %202 {offsets = [0, 0], sizes = [4, 16], strides = [1, 1]} : vector<4x65xf32> to vector<4x16xf32>
    %204 = arith.negf %203 : vector<4x16xf32>
    %205 = math.exp %204 : vector<4x16xf32>
    %cst_54 = arith.constant 1.000000e+00 : f32
    %206 = vector.broadcast %cst_54 : f32 to vector<4x16xf32>
    %207 = arith.addf %206, %205 : vector<4x16xf32>
    %208 = arith.divf %206, %207 : vector<4x16xf32>
    %209 = vector.extract_strided_slice %202 {offsets = [0, 16], sizes = [4, 16], strides = [1, 1]} : vector<4x65xf32> to vector<4x16xf32>
    %210 = arith.negf %209 : vector<4x16xf32>
    %211 = math.exp %210 : vector<4x16xf32>
    %cst_55 = arith.constant 1.000000e+00 : f32
    %212 = vector.broadcast %cst_55 : f32 to vector<4x16xf32>
    %213 = arith.addf %212, %211 : vector<4x16xf32>
    %214 = arith.divf %212, %213 : vector<4x16xf32>
    %215 = vector.extract_strided_slice %202 {offsets = [0, 32], sizes = [4, 16], strides = [1, 1]} : vector<4x65xf32> to vector<4x16xf32>
    %216 = arith.negf %215 : vector<4x16xf32>
    %217 = math.exp %216 : vector<4x16xf32>
    %cst_56 = arith.constant 1.000000e+00 : f32
    %218 = vector.broadcast %cst_56 : f32 to vector<4x16xf32>
    %219 = arith.addf %218, %217 : vector<4x16xf32>
    %220 = arith.divf %218, %219 : vector<4x16xf32>
    %221 = vector.extract_strided_slice %202 {offsets = [0, 48], sizes = [4, 16], strides = [1, 1]} : vector<4x65xf32> to vector<4x16xf32>
    %222 = math.tanh %221 : vector<4x16xf32>
    %223 = vector.extract_strided_slice %202 {offsets = [0, 64], sizes = [4, 1], strides = [1, 1]} : vector<4x65xf32> to vector<4x1xf32>
    %cst_57 = arith.constant 1.000000e+00 : f32
    %224 = vector.broadcast %cst_57 : f32 to vector<4x1xf32>
    %225 = arith.mulf %224, %223 : vector<4x1xf32>
    %cst_58 = arith.constant 1.000000e+00 : f32
    %226 = vector.broadcast %cst_58 : f32 to vector<4x1xf32>
    %227 = arith.addf %225, %226 : vector<4x1xf32>
    %cst_59 = arith.constant 5.000000e-01 : f32
    %228 = vector.broadcast %cst_59 : f32 to vector<4x1xf32>
    %229 = arith.mulf %227, %228 : vector<4x1xf32>
    %cst_60 = arith.constant 0.000000e+00 : f32
    %cst_61 = arith.constant 1.000000e+00 : f32
    %230 = vector.broadcast %cst_60 : f32 to vector<4x1xf32>
    %231 = arith.maximumf %230, %229 : vector<4x1xf32>
    %232 = vector.broadcast %cst_61 : f32 to vector<4x1xf32>
    %233 = arith.minimumf %232, %231 : vector<4x1xf32>
    %234 = arith.mulf %214, %222 : vector<4x16xf32>
    %cst_62 = arith.constant 1.000000e+00 : f32
    %235 = vector.broadcast %cst_62 : f32 to vector<4x1xf32>
    %236 = arith.subf %235, %103 : vector<4x1xf32>
    %237 = vector.broadcast %103 : vector<4x1xf32> to vector<4x16xf32>
    %238 = arith.mulf %237, %234 : vector<4x16xf32>
    %cst_63 = arith.constant 1.000000e+00 : f32
    %239 = vector.broadcast %cst_63 : f32 to vector<4x1xf32>
    %240 = arith.subf %239, %182 : vector<4x1xf32>
    %241 = arith.mulf %236, %240 : vector<4x1xf32>
    %242 = vector.broadcast %241 : vector<4x1xf32> to vector<4x16xf32>
    %243 = arith.mulf %242, %120 : vector<4x16xf32>
    %244 = arith.addf %238, %243 : vector<4x16xf32>
    %245 = arith.mulf %236, %182 : vector<4x1xf32>
    %246 = arith.mulf %208, %120 : vector<4x16xf32>
    %247 = arith.addf %246, %234 : vector<4x16xf32>
    %248 = vector.broadcast %245 : vector<4x1xf32> to vector<4x16xf32>
    %249 = arith.mulf %248, %247 : vector<4x16xf32>
    %250 = arith.addf %244, %249 : vector<4x16xf32>
    %251 = math.tanh %250 : vector<4x16xf32>
    %252 = arith.mulf %220, %251 : vector<4x16xf32>
    %253 = vector.broadcast %103 : vector<4x1xf32> to vector<4x16xf32>
    %254 = arith.mulf %253, %252 : vector<4x16xf32>
    %cst_64 = arith.constant 1.000000e+00 : f32
    %255 = vector.broadcast %cst_64 : f32 to vector<4x1xf32>
    %256 = arith.subf %255, %182 : vector<4x1xf32>
    %257 = arith.mulf %236, %256 : vector<4x1xf32>
    %258 = vector.broadcast %257 : vector<4x1xf32> to vector<4x16xf32>
    %259 = arith.mulf %258, %134 : vector<4x16xf32>
    %260 = arith.addf %254, %259 : vector<4x16xf32>
    %261 = arith.mulf %236, %182 : vector<4x1xf32>
    %262 = vector.broadcast %261 : vector<4x1xf32> to vector<4x16xf32>
    %263 = arith.mulf %262, %252 : vector<4x16xf32>
    %264 = arith.addf %260, %263 : vector<4x16xf32>
    %265 = vector.broadcast %233 : vector<4x1xf32> to vector<4x16xf32>
    %266 = arith.mulf %264, %265 : vector<4x16xf32>
    %267 = arith.index_cast %c1_i32 : i32 to index
    %c0_65 = arith.constant 0 : index
    %c0_66 = arith.constant 0 : index
    %268 = vector.load %arg3[%267, %c0_65, %c0_66] : memref<6x4x16xf32, #tpu.memory_space<vmem>>, vector<1x4x16xf32>
    %269 = vector.shape_cast %268 : vector<1x4x16xf32> to vector<4x16xf32>
    %270 = vector.shape_cast %266 : vector<4x16xf32> to vector<1x4x16xf32>
    tpu.vector_store %arg3[%267, %c0_65, %c0_66], %270 {strides = array<i32>} : memref<6x4x16xf32, #tpu.memory_space<vmem>>, vector<1x4x16xf32>,
    %c2_i32 = arith.constant 2 : i32
    %271 = arith.index_cast %c2_i32 : i32 to index
    %c0_67 = arith.constant 0 : index
    %c0_68 = arith.constant 0 : index
    %272 = vector.load %arg0[%271, %c0_67, %c0_68] : memref<6x4x8xf32, #tpu.memory_space<vmem>>, vector<1x4x8xf32>
    %273 = vector.shape_cast %272 : vector<1x4x8xf32> to vector<4x8xf32>
    %cst_69 = arith.constant 1.000000e+00 : f32
    %274 = vector.broadcast %cst_69 : f32 to vector<4x1xf32>
    %275 = arith.subf %274, %182 : vector<4x1xf32>
    %276 = vector.broadcast %275 : vector<4x1xf32> to vector<4x32xf32>
    %277 = arith.mulf %276, %194 : vector<4x32xf32>
    %278 = vector.broadcast %182 : vector<4x1xf32> to vector<4x16xf32>
    %279 = arith.mulf %278, %264 : vector<4x16xf32>
    %280 = tpu.concatenate %277, %279, %273, %2, %3 in 1 : vector<4x32xf32>, vector<4x16xf32>, vector<4x8xf32>, vector<4x1xf32>, vector<4x7xf32> -> vector<4x64xf32>
    %cst_70 = arith.constant dense<0.000000e+00> : vector<4x129xf32>
    %281 = tpu.matmul %280, %0, %cst_70 {dimension_numbers = #tpu.dot_dimension_numbers<[1], [0], [0], [1], [0, 0, 1, 1], [], []>} : vector<4x64xf32>, vector<64x129xf32>, vector<4x129xf32> -> vector<4x129xf32>
    %282 = vector.extract_strided_slice %281 {offsets = [0, 0], sizes = [4, 32], strides = [1, 1]} : vector<4x129xf32> to vector<4x32xf32>
    %283 = arith.negf %282 : vector<4x32xf32>
    %284 = math.exp %283 : vector<4x32xf32>
    %cst_71 = arith.constant 1.000000e+00 : f32
    %285 = vector.broadcast %cst_71 : f32 to vector<4x32xf32>
    %286 = arith.addf %285, %284 : vector<4x32xf32>
    %287 = arith.divf %285, %286 : vector<4x32xf32>
    %288 = vector.extract_strided_slice %281 {offsets = [0, 32], sizes = [4, 32], strides = [1, 1]} : vector<4x129xf32> to vector<4x32xf32>
    %289 = arith.negf %288 : vector<4x32xf32>
    %290 = math.exp %289 : vector<4x32xf32>
    %cst_72 = arith.constant 1.000000e+00 : f32
    %291 = vector.broadcast %cst_72 : f32 to vector<4x32xf32>
    %292 = arith.addf %291, %290 : vector<4x32xf32>
    %293 = arith.divf %291, %292 : vector<4x32xf32>
    %294 = vector.extract_strided_slice %281 {offsets = [0, 64], sizes = [4, 32], strides = [1, 1]} : vector<4x129xf32> to vector<4x32xf32>
    %295 = arith.negf %294 : vector<4x32xf32>
    %296 = math.exp %295 : vector<4x32xf32>
    %cst_73 = arith.constant 1.000000e+00 : f32
    %297 = vector.broadcast %cst_73 : f32 to vector<4x32xf32>
    %298 = arith.addf %297, %296 : vector<4x32xf32>
    %299 = arith.divf %297, %298 : vector<4x32xf32>
    %300 = vector.extract_strided_slice %281 {offsets = [0, 96], sizes = [4, 32], strides = [1, 1]} : vector<4x129xf32> to vector<4x32xf32>
    %301 = math.tanh %300 : vector<4x32xf32>
    %302 = vector.extract_strided_slice %281 {offsets = [0, 128], sizes = [4, 1], strides = [1, 1]} : vector<4x129xf32> to vector<4x1xf32>
    %cst_74 = arith.constant 1.000000e+00 : f32
    %303 = vector.broadcast %cst_74 : f32 to vector<4x1xf32>
    %304 = arith.mulf %303, %302 : vector<4x1xf32>
    %cst_75 = arith.constant 1.000000e+00 : f32
    %305 = vector.broadcast %cst_75 : f32 to vector<4x1xf32>
    %306 = arith.addf %304, %305 : vector<4x1xf32>
    %cst_76 = arith.constant 5.000000e-01 : f32
    %307 = vector.broadcast %cst_76 : f32 to vector<4x1xf32>
    %308 = arith.mulf %306, %307 : vector<4x1xf32>
    %cst_77 = arith.constant 0.000000e+00 : f32
    %cst_78 = arith.constant 1.000000e+00 : f32
    %309 = vector.broadcast %cst_77 : f32 to vector<4x1xf32>
    %310 = arith.maximumf %309, %308 : vector<4x1xf32>
    %311 = vector.broadcast %cst_78 : f32 to vector<4x1xf32>
    %312 = arith.minimumf %311, %310 : vector<4x1xf32>
    %313 = arith.mulf %293, %301 : vector<4x32xf32>
    %314 = vector.broadcast %182 : vector<4x1xf32> to vector<4x32xf32>
    %315 = arith.mulf %314, %313 : vector<4x32xf32>
    %cst_79 = arith.constant 1.000000e+00 : f32
    %316 = vector.broadcast %cst_79 : f32 to vector<4x1xf32>
    %317 = arith.subf %316, %182 : vector<4x1xf32>
    %318 = arith.mulf %287, %192 : vector<4x32xf32>
    %319 = arith.addf %318, %313 : vector<4x32xf32>
    %320 = vector.broadcast %317 : vector<4x1xf32> to vector<4x32xf32>
    %321 = arith.mulf %320, %319 : vector<4x32xf32>
    %322 = arith.addf %315, %321 : vector<4x32xf32>
    %323 = math.tanh %322 : vector<4x32xf32>
    %324 = arith.mulf %299, %323 : vector<4x32xf32>
    %cst_80 = arith.constant 1.000000e+00 : f32
    %325 = vector.broadcast %cst_80 : f32 to vector<4x1xf32>
    %326 = arith.subf %325, %233 : vector<4x1xf32>
    %327 = vector.broadcast %326 : vector<4x1xf32> to vector<4x16xf32>
    %328 = arith.mulf %327, %264 : vector<4x16xf32>
    %329 = vector.broadcast %312 : vector<4x1xf32> to vector<4x32xf32>
    %330 = arith.mulf %329, %324 : vector<4x32xf32>
    %331 = tpu.concatenate %328, %330, %2, %4 in 1 : vector<4x16xf32>, vector<4x32xf32>, vector<4x1xf32>, vector<4x7xf32> -> vector<4x56xf32>
    %cst_81 = arith.constant dense<0.000000e+00> : vector<4x65xf32>
    %332 = tpu.matmul %331, %1, %cst_81 {dimension_numbers = #tpu.dot_dimension_numbers<[1], [0], [0], [1], [0, 0, 1, 1], [], []>} : vector<4x56xf32>, vector<56x65xf32>, vector<4x65xf32> -> vector<4x65xf32>
    %333 = vector.extract_strided_slice %332 {offsets = [0, 0], sizes = [4, 16], strides = [1, 1]} : vector<4x65xf32> to vector<4x16xf32>
    %334 = arith.negf %333 : vector<4x16xf32>
    %335 = math.exp %334 : vector<4x16xf32>
    %cst_82 = arith.constant 1.000000e+00 : f32
    %336 = vector.broadcast %cst_82 : f32 to vector<4x16xf32>
    %337 = arith.addf %336, %335 : vector<4x16xf32>
    %338 = arith.divf %336, %337 : vector<4x16xf32>
    %339 = vector.extract_strided_slice %332 {offsets = [0, 16], sizes = [4, 16], strides = [1, 1]} : vector<4x65xf32> to vector<4x16xf32>
    %340 = arith.negf %339 : vector<4x16xf32>
    %341 = math.exp %340 : vector<4x16xf32>
    %cst_83 = arith.constant 1.000000e+00 : f32
    %342 = vector.broadcast %cst_83 : f32 to vector<4x16xf32>
    %343 = arith.addf %342, %341 : vector<4x16xf32>
    %344 = arith.divf %342, %343 : vector<4x16xf32>
    %345 = vector.extract_strided_slice %332 {offsets = [0, 32], sizes = [4, 16], strides = [1, 1]} : vector<4x65xf32> to vector<4x16xf32>
    %346 = arith.negf %345 : vector<4x16xf32>
    %347 = math.exp %346 : vector<4x16xf32>
    %cst_84 = arith.constant 1.000000e+00 : f32
    %348 = vector.broadcast %cst_84 : f32 to vector<4x16xf32>
    %349 = arith.addf %348, %347 : vector<4x16xf32>
    %350 = arith.divf %348, %349 : vector<4x16xf32>
    %351 = vector.extract_strided_slice %332 {offsets = [0, 48], sizes = [4, 16], strides = [1, 1]} : vector<4x65xf32> to vector<4x16xf32>
    %352 = math.tanh %351 : vector<4x16xf32>
    %353 = vector.extract_strided_slice %332 {offsets = [0, 64], sizes = [4, 1], strides = [1, 1]} : vector<4x65xf32> to vector<4x1xf32>
    %cst_85 = arith.constant 1.000000e+00 : f32
    %354 = vector.broadcast %cst_85 : f32 to vector<4x1xf32>
    %355 = arith.mulf %354, %353 : vector<4x1xf32>
    %cst_86 = arith.constant 1.000000e+00 : f32
    %356 = vector.broadcast %cst_86 : f32 to vector<4x1xf32>
    %357 = arith.addf %355, %356 : vector<4x1xf32>
    %cst_87 = arith.constant 5.000000e-01 : f32
    %358 = vector.broadcast %cst_87 : f32 to vector<4x1xf32>
    %359 = arith.mulf %357, %358 : vector<4x1xf32>
    %cst_88 = arith.constant 0.000000e+00 : f32
    %cst_89 = arith.constant 1.000000e+00 : f32
    %360 = vector.broadcast %cst_88 : f32 to vector<4x1xf32>
    %361 = arith.maximumf %360, %359 : vector<4x1xf32>
    %362 = vector.broadcast %cst_89 : f32 to vector<4x1xf32>
    %363 = arith.minimumf %362, %361 : vector<4x1xf32>
    %364 = arith.mulf %344, %352 : vector<4x16xf32>
    %cst_90 = arith.constant 1.000000e+00 : f32
    %365 = vector.broadcast %cst_90 : f32 to vector<4x1xf32>
    %366 = arith.subf %365, %233 : vector<4x1xf32>
    %367 = vector.broadcast %233 : vector<4x1xf32> to vector<4x16xf32>
    %368 = arith.mulf %367, %364 : vector<4x16xf32>
    %cst_91 = arith.constant 1.000000e+00 : f32
    %369 = vector.broadcast %cst_91 : f32 to vector<4x1xf32>
    %370 = arith.subf %369, %312 : vector<4x1xf32>
    %371 = arith.mulf %366, %370 : vector<4x1xf32>
    %372 = vector.broadcast %371 : vector<4x1xf32> to vector<4x16xf32>
    %373 = arith.mulf %372, %250 : vector<4x16xf32>
    %374 = arith.addf %368, %373 : vector<4x16xf32>
    %375 = arith.mulf %366, %312 : vector<4x1xf32>
    %376 = arith.mulf %338, %250 : vector<4x16xf32>
    %377 = arith.addf %376, %364 : vector<4x16xf32>
    %378 = vector.broadcast %375 : vector<4x1xf32> to vector<4x16xf32>
    %379 = arith.mulf %378, %377 : vector<4x16xf32>
    %380 = arith.addf %374, %379 : vector<4x16xf32>
    %381 = math.tanh %380 : vector<4x16xf32>
    %382 = arith.mulf %350, %381 : vector<4x16xf32>
    %383 = vector.broadcast %233 : vector<4x1xf32> to vector<4x16xf32>
    %384 = arith.mulf %383, %382 : vector<4x16xf32>
    %cst_92 = arith.constant 1.000000e+00 : f32
    %385 = vector.broadcast %cst_92 : f32 to vector<4x1xf32>
    %386 = arith.subf %385, %312 : vector<4x1xf32>
    %387 = arith.mulf %366, %386 : vector<4x1xf32>
    %388 = vector.broadcast %387 : vector<4x1xf32> to vector<4x16xf32>
    %389 = arith.mulf %388, %264 : vector<4x16xf32>
    %390 = arith.addf %384, %389 : vector<4x16xf32>
    %391 = arith.mulf %366, %312 : vector<4x1xf32>
    %392 = vector.broadcast %391 : vector<4x1xf32> to vector<4x16xf32>
    %393 = arith.mulf %392, %382 : vector<4x16xf32>
    %394 = arith.addf %390, %393 : vector<4x16xf32>
    %395 = vector.broadcast %363 : vector<4x1xf32> to vector<4x16xf32>
    %396 = arith.mulf %394, %395 : vector<4x16xf32>
    %397 = arith.index_cast %c2_i32 : i32 to index
    %c0_93 = arith.constant 0 : index
    %c0_94 = arith.constant 0 : index
    %398 = vector.load %arg3[%397, %c0_93, %c0_94] : memref<6x4x16xf32, #tpu.memory_space<vmem>>, vector<1x4x16xf32>
    %399 = vector.shape_cast %398 : vector<1x4x16xf32> to vector<4x16xf32>
    %400 = vector.shape_cast %396 : vector<4x16xf32> to vector<1x4x16xf32>
    tpu.vector_store %arg3[%397, %c0_93, %c0_94], %400 {strides = array<i32>} : memref<6x4x16xf32, #tpu.memory_space<vmem>>, vector<1x4x16xf32>,
    %c3_i32 = arith.constant 3 : i32
    %401 = arith.index_cast %c3_i32 : i32 to index
    %c0_95 = arith.constant 0 : index
    %c0_96 = arith.constant 0 : index
    %402 = vector.load %arg0[%401, %c0_95, %c0_96] : memref<6x4x8xf32, #tpu.memory_space<vmem>>, vector<1x4x8xf32>
    %403 = vector.shape_cast %402 : vector<1x4x8xf32> to vector<4x8xf32>
    %cst_97 = arith.constant 1.000000e+00 : f32
    %404 = vector.broadcast %cst_97 : f32 to vector<4x1xf32>
    %405 = arith.subf %404, %312 : vector<4x1xf32>
    %406 = vector.broadcast %405 : vector<4x1xf32> to vector<4x32xf32>
    %407 = arith.mulf %406, %324 : vector<4x32xf32>
    %408 = vector.broadcast %312 : vector<4x1xf32> to vector<4x16xf32>
    %409 = arith.mulf %408, %394 : vector<4x16xf32>
    %410 = tpu.concatenate %407, %409, %403, %2, %3 in 1 : vector<4x32xf32>, vector<4x16xf32>, vector<4x8xf32>, vector<4x1xf32>, vector<4x7xf32> -> vector<4x64xf32>
    %cst_98 = arith.constant dense<0.000000e+00> : vector<4x129xf32>
    %411 = tpu.matmul %410, %0, %cst_98 {dimension_numbers = #tpu.dot_dimension_numbers<[1], [0], [0], [1], [0, 0, 1, 1], [], []>} : vector<4x64xf32>, vector<64x129xf32>, vector<4x129xf32> -> vector<4x129xf32>
    %412 = vector.extract_strided_slice %411 {offsets = [0, 0], sizes = [4, 32], strides = [1, 1]} : vector<4x129xf32> to vector<4x32xf32>
    %413 = arith.negf %412 : vector<4x32xf32>
    %414 = math.exp %413 : vector<4x32xf32>
    %cst_99 = arith.constant 1.000000e+00 : f32
    %415 = vector.broadcast %cst_99 : f32 to vector<4x32xf32>
    %416 = arith.addf %415, %414 : vector<4x32xf32>
    %417 = arith.divf %415, %416 : vector<4x32xf32>
    %418 = vector.extract_strided_slice %411 {offsets = [0, 32], sizes = [4, 32], strides = [1, 1]} : vector<4x129xf32> to vector<4x32xf32>
    %419 = arith.negf %418 : vector<4x32xf32>
    %420 = math.exp %419 : vector<4x32xf32>
    %cst_100 = arith.constant 1.000000e+00 : f32
    %421 = vector.broadcast %cst_100 : f32 to vector<4x32xf32>
    %422 = arith.addf %421, %420 : vector<4x32xf32>
    %423 = arith.divf %421, %422 : vector<4x32xf32>
    %424 = vector.extract_strided_slice %411 {offsets = [0, 64], sizes = [4, 32], strides = [1, 1]} : vector<4x129xf32> to vector<4x32xf32>
    %425 = arith.negf %424 : vector<4x32xf32>
    %426 = math.exp %425 : vector<4x32xf32>
    %cst_101 = arith.constant 1.000000e+00 : f32
    %427 = vector.broadcast %cst_101 : f32 to vector<4x32xf32>
    %428 = arith.addf %427, %426 : vector<4x32xf32>
    %429 = arith.divf %427, %428 : vector<4x32xf32>
    %430 = vector.extract_strided_slice %411 {offsets = [0, 96], sizes = [4, 32], strides = [1, 1]} : vector<4x129xf32> to vector<4x32xf32>
    %431 = math.tanh %430 : vector<4x32xf32>
    %432 = vector.extract_strided_slice %411 {offsets = [0, 128], sizes = [4, 1], strides = [1, 1]} : vector<4x129xf32> to vector<4x1xf32>
    %cst_102 = arith.constant 1.000000e+00 : f32
    %433 = vector.broadcast %cst_102 : f32 to vector<4x1xf32>
    %434 = arith.mulf %433, %432 : vector<4x1xf32>
    %cst_103 = arith.constant 1.000000e+00 : f32
    %435 = vector.broadcast %cst_103 : f32 to vector<4x1xf32>
    %436 = arith.addf %434, %435 : vector<4x1xf32>
    %cst_104 = arith.constant 5.000000e-01 : f32
    %437 = vector.broadcast %cst_104 : f32 to vector<4x1xf32>
    %438 = arith.mulf %436, %437 : vector<4x1xf32>
    %cst_105 = arith.constant 0.000000e+00 : f32
    %cst_106 = arith.constant 1.000000e+00 : f32
    %439 = vector.broadcast %cst_105 : f32 to vector<4x1xf32>
    %440 = arith.maximumf %439, %438 : vector<4x1xf32>
    %441 = vector.broadcast %cst_106 : f32 to vector<4x1xf32>
    %442 = arith.minimumf %441, %440 : vector<4x1xf32>
    %443 = arith.mulf %423, %431 : vector<4x32xf32>
    %444 = vector.broadcast %312 : vector<4x1xf32> to vector<4x32xf32>
    %445 = arith.mulf %444, %443 : vector<4x32xf32>
    %cst_107 = arith.constant 1.000000e+00 : f32
    %446 = vector.broadcast %cst_107 : f32 to vector<4x1xf32>
    %447 = arith.subf %446, %312 : vector<4x1xf32>
    %448 = arith.mulf %417, %322 : vector<4x32xf32>
    %449 = arith.addf %448, %443 : vector<4x32xf32>
    %450 = vector.broadcast %447 : vector<4x1xf32> to vector<4x32xf32>
    %451 = arith.mulf %450, %449 : vector<4x32xf32>
    %452 = arith.addf %445, %451 : vector<4x32xf32>
    %453 = math.tanh %452 : vector<4x32xf32>
    %454 = arith.mulf %429, %453 : vector<4x32xf32>
    %cst_108 = arith.constant 1.000000e+00 : f32
    %455 = vector.broadcast %cst_108 : f32 to vector<4x1xf32>
    %456 = arith.subf %455, %363 : vector<4x1xf32>
    %457 = vector.broadcast %456 : vector<4x1xf32> to vector<4x16xf32>
    %458 = arith.mulf %457, %394 : vector<4x16xf32>
    %459 = vector.broadcast %442 : vector<4x1xf32> to vector<4x32xf32>
    %460 = arith.mulf %459, %454 : vector<4x32xf32>
    %461 = tpu.concatenate %458, %460, %2, %4 in 1 : vector<4x16xf32>, vector<4x32xf32>, vector<4x1xf32>, vector<4x7xf32> -> vector<4x56xf32>
    %cst_109 = arith.constant dense<0.000000e+00> : vector<4x65xf32>
    %462 = tpu.matmul %461, %1, %cst_109 {dimension_numbers = #tpu.dot_dimension_numbers<[1], [0], [0], [1], [0, 0, 1, 1], [], []>} : vector<4x56xf32>, vector<56x65xf32>, vector<4x65xf32> -> vector<4x65xf32>
    %463 = vector.extract_strided_slice %462 {offsets = [0, 0], sizes = [4, 16], strides = [1, 1]} : vector<4x65xf32> to vector<4x16xf32>
    %464 = arith.negf %463 : vector<4x16xf32>
    %465 = math.exp %464 : vector<4x16xf32>
    %cst_110 = arith.constant 1.000000e+00 : f32
    %466 = vector.broadcast %cst_110 : f32 to vector<4x16xf32>
    %467 = arith.addf %466, %465 : vector<4x16xf32>
    %468 = arith.divf %466, %467 : vector<4x16xf32>
    %469 = vector.extract_strided_slice %462 {offsets = [0, 16], sizes = [4, 16], strides = [1, 1]} : vector<4x65xf32> to vector<4x16xf32>
    %470 = arith.negf %469 : vector<4x16xf32>
    %471 = math.exp %470 : vector<4x16xf32>
    %cst_111 = arith.constant 1.000000e+00 : f32
    %472 = vector.broadcast %cst_111 : f32 to vector<4x16xf32>
    %473 = arith.addf %472, %471 : vector<4x16xf32>
    %474 = arith.divf %472, %473 : vector<4x16xf32>
    %475 = vector.extract_strided_slice %462 {offsets = [0, 32], sizes = [4, 16], strides = [1, 1]} : vector<4x65xf32> to vector<4x16xf32>
    %476 = arith.negf %475 : vector<4x16xf32>
    %477 = math.exp %476 : vector<4x16xf32>
    %cst_112 = arith.constant 1.000000e+00 : f32
    %478 = vector.broadcast %cst_112 : f32 to vector<4x16xf32>
    %479 = arith.addf %478, %477 : vector<4x16xf32>
    %480 = arith.divf %478, %479 : vector<4x16xf32>
    %481 = vector.extract_strided_slice %462 {offsets = [0, 48], sizes = [4, 16], strides = [1, 1]} : vector<4x65xf32> to vector<4x16xf32>
    %482 = math.tanh %481 : vector<4x16xf32>
    %483 = vector.extract_strided_slice %462 {offsets = [0, 64], sizes = [4, 1], strides = [1, 1]} : vector<4x65xf32> to vector<4x1xf32>
    %cst_113 = arith.constant 1.000000e+00 : f32
    %484 = vector.broadcast %cst_113 : f32 to vector<4x1xf32>
    %485 = arith.mulf %484, %483 : vector<4x1xf32>
    %cst_114 = arith.constant 1.000000e+00 : f32
    %486 = vector.broadcast %cst_114 : f32 to vector<4x1xf32>
    %487 = arith.addf %485, %486 : vector<4x1xf32>
    %cst_115 = arith.constant 5.000000e-01 : f32
    %488 = vector.broadcast %cst_115 : f32 to vector<4x1xf32>
    %489 = arith.mulf %487, %488 : vector<4x1xf32>
    %cst_116 = arith.constant 0.000000e+00 : f32
    %cst_117 = arith.constant 1.000000e+00 : f32
    %490 = vector.broadcast %cst_116 : f32 to vector<4x1xf32>
    %491 = arith.maximumf %490, %489 : vector<4x1xf32>
    %492 = vector.broadcast %cst_117 : f32 to vector<4x1xf32>
    %493 = arith.minimumf %492, %491 : vector<4x1xf32>
    %494 = arith.mulf %474, %482 : vector<4x16xf32>
    %cst_118 = arith.constant 1.000000e+00 : f32
    %495 = vector.broadcast %cst_118 : f32 to vector<4x1xf32>
    %496 = arith.subf %495, %363 : vector<4x1xf32>
    %497 = vector.broadcast %363 : vector<4x1xf32> to vector<4x16xf32>
    %498 = arith.mulf %497, %494 : vector<4x16xf32>
    %cst_119 = arith.constant 1.000000e+00 : f32
    %499 = vector.broadcast %cst_119 : f32 to vector<4x1xf32>
    %500 = arith.subf %499, %442 : vector<4x1xf32>
    %501 = arith.mulf %496, %500 : vector<4x1xf32>
    %502 = vector.broadcast %501 : vector<4x1xf32> to vector<4x16xf32>
    %503 = arith.mulf %502, %380 : vector<4x16xf32>
    %504 = arith.addf %498, %503 : vector<4x16xf32>
    %505 = arith.mulf %496, %442 : vector<4x1xf32>
    %506 = arith.mulf %468, %380 : vector<4x16xf32>
    %507 = arith.addf %506, %494 : vector<4x16xf32>
    %508 = vector.broadcast %505 : vector<4x1xf32> to vector<4x16xf32>
    %509 = arith.mulf %508, %507 : vector<4x16xf32>
    %510 = arith.addf %504, %509 : vector<4x16xf32>
    %511 = math.tanh %510 : vector<4x16xf32>
    %512 = arith.mulf %480, %511 : vector<4x16xf32>
    %513 = vector.broadcast %363 : vector<4x1xf32> to vector<4x16xf32>
    %514 = arith.mulf %513, %512 : vector<4x16xf32>
    %cst_120 = arith.constant 1.000000e+00 : f32
    %515 = vector.broadcast %cst_120 : f32 to vector<4x1xf32>
    %516 = arith.subf %515, %442 : vector<4x1xf32>
    %517 = arith.mulf %496, %516 : vector<4x1xf32>
    %518 = vector.broadcast %517 : vector<4x1xf32> to vector<4x16xf32>
    %519 = arith.mulf %518, %394 : vector<4x16xf32>
    %520 = arith.addf %514, %519 : vector<4x16xf32>
    %521 = arith.mulf %496, %442 : vector<4x1xf32>
    %522 = vector.broadcast %521 : vector<4x1xf32> to vector<4x16xf32>
    %523 = arith.mulf %522, %512 : vector<4x16xf32>
    %524 = arith.addf %520, %523 : vector<4x16xf32>
    %525 = vector.broadcast %493 : vector<4x1xf32> to vector<4x16xf32>
    %526 = arith.mulf %524, %525 : vector<4x16xf32>
    %527 = arith.index_cast %c3_i32 : i32 to index
    %c0_121 = arith.constant 0 : index
    %c0_122 = arith.constant 0 : index
    %528 = vector.load %arg3[%527, %c0_121, %c0_122] : memref<6x4x16xf32, #tpu.memory_space<vmem>>, vector<1x4x16xf32>
    %529 = vector.shape_cast %528 : vector<1x4x16xf32> to vector<4x16xf32>
    %530 = vector.shape_cast %526 : vector<4x16xf32> to vector<1x4x16xf32>
    tpu.vector_store %arg3[%527, %c0_121, %c0_122], %530 {strides = array<i32>} : memref<6x4x16xf32, #tpu.memory_space<vmem>>, vector<1x4x16xf32>,
    %c4_i32 = arith.constant 4 : i32
    %531 = arith.index_cast %c4_i32 : i32 to index
    %c0_123 = arith.constant 0 : index
    %c0_124 = arith.constant 0 : index
    %532 = vector.load %arg0[%531, %c0_123, %c0_124] : memref<6x4x8xf32, #tpu.memory_space<vmem>>, vector<1x4x8xf32>
    %533 = vector.shape_cast %532 : vector<1x4x8xf32> to vector<4x8xf32>
    %cst_125 = arith.constant 1.000000e+00 : f32
    %534 = vector.broadcast %cst_125 : f32 to vector<4x1xf32>
    %535 = arith.subf %534, %442 : vector<4x1xf32>
    %536 = vector.broadcast %535 : vector<4x1xf32> to vector<4x32xf32>
    %537 = arith.mulf %536, %454 : vector<4x32xf32>
    %538 = vector.broadcast %442 : vector<4x1xf32> to vector<4x16xf32>
    %539 = arith.mulf %538, %524 : vector<4x16xf32>
    %540 = tpu.concatenate %537, %539, %533, %2, %3 in 1 : vector<4x32xf32>, vector<4x16xf32>, vector<4x8xf32>, vector<4x1xf32>, vector<4x7xf32> -> vector<4x64xf32>
    %cst_126 = arith.constant dense<0.000000e+00> : vector<4x129xf32>
    %541 = tpu.matmul %540, %0, %cst_126 {dimension_numbers = #tpu.dot_dimension_numbers<[1], [0], [0], [1], [0, 0, 1, 1], [], []>} : vector<4x64xf32>, vector<64x129xf32>, vector<4x129xf32> -> vector<4x129xf32>
    %542 = vector.extract_strided_slice %541 {offsets = [0, 0], sizes = [4, 32], strides = [1, 1]} : vector<4x129xf32> to vector<4x32xf32>
    %543 = arith.negf %542 : vector<4x32xf32>
    %544 = math.exp %543 : vector<4x32xf32>
    %cst_127 = arith.constant 1.000000e+00 : f32
    %545 = vector.broadcast %cst_127 : f32 to vector<4x32xf32>
    %546 = arith.addf %545, %544 : vector<4x32xf32>
    %547 = arith.divf %545, %546 : vector<4x32xf32>
    %548 = vector.extract_strided_slice %541 {offsets = [0, 32], sizes = [4, 32], strides = [1, 1]} : vector<4x129xf32> to vector<4x32xf32>
    %549 = arith.negf %548 : vector<4x32xf32>
    %550 = math.exp %549 : vector<4x32xf32>
    %cst_128 = arith.constant 1.000000e+00 : f32
    %551 = vector.broadcast %cst_128 : f32 to vector<4x32xf32>
    %552 = arith.addf %551, %550 : vector<4x32xf32>
    %553 = arith.divf %551, %552 : vector<4x32xf32>
    %554 = vector.extract_strided_slice %541 {offsets = [0, 64], sizes = [4, 32], strides = [1, 1]} : vector<4x129xf32> to vector<4x32xf32>
    %555 = arith.negf %554 : vector<4x32xf32>
    %556 = math.exp %555 : vector<4x32xf32>
    %cst_129 = arith.constant 1.000000e+00 : f32
    %557 = vector.broadcast %cst_129 : f32 to vector<4x32xf32>
    %558 = arith.addf %557, %556 : vector<4x32xf32>
    %559 = arith.divf %557, %558 : vector<4x32xf32>
    %560 = vector.extract_strided_slice %541 {offsets = [0, 96], sizes = [4, 32], strides = [1, 1]} : vector<4x129xf32> to vector<4x32xf32>
    %561 = math.tanh %560 : vector<4x32xf32>
    %562 = vector.extract_strided_slice %541 {offsets = [0, 128], sizes = [4, 1], strides = [1, 1]} : vector<4x129xf32> to vector<4x1xf32>
    %cst_130 = arith.constant 1.000000e+00 : f32
    %563 = vector.broadcast %cst_130 : f32 to vector<4x1xf32>
    %564 = arith.mulf %563, %562 : vector<4x1xf32>
    %cst_131 = arith.constant 1.000000e+00 : f32
    %565 = vector.broadcast %cst_131 : f32 to vector<4x1xf32>
    %566 = arith.addf %564, %565 : vector<4x1xf32>
    %cst_132 = arith.constant 5.000000e-01 : f32
    %567 = vector.broadcast %cst_132 : f32 to vector<4x1xf32>
    %568 = arith.mulf %566, %567 : vector<4x1xf32>
    %cst_133 = arith.constant 0.000000e+00 : f32
    %cst_134 = arith.constant 1.000000e+00 : f32
    %569 = vector.broadcast %cst_133 : f32 to vector<4x1xf32>
    %570 = arith.maximumf %569, %568 : vector<4x1xf32>
    %571 = vector.broadcast %cst_134 : f32 to vector<4x1xf32>
    %572 = arith.minimumf %571, %570 : vector<4x1xf32>
    %573 = arith.mulf %553, %561 : vector<4x32xf32>
    %574 = vector.broadcast %442 : vector<4x1xf32> to vector<4x32xf32>
    %575 = arith.mulf %574, %573 : vector<4x32xf32>
    %cst_135 = arith.constant 1.000000e+00 : f32
    %576 = vector.broadcast %cst_135 : f32 to vector<4x1xf32>
    %577 = arith.subf %576, %442 : vector<4x1xf32>
    %578 = arith.mulf %547, %452 : vector<4x32xf32>
    %579 = arith.addf %578, %573 : vector<4x32xf32>
    %580 = vector.broadcast %577 : vector<4x1xf32> to vector<4x32xf32>
    %581 = arith.mulf %580, %579 : vector<4x32xf32>
    %582 = arith.addf %575, %581 : vector<4x32xf32>
    %583 = math.tanh %582 : vector<4x32xf32>
    %584 = arith.mulf %559, %583 : vector<4x32xf32>
    %cst_136 = arith.constant 1.000000e+00 : f32
    %585 = vector.broadcast %cst_136 : f32 to vector<4x1xf32>
    %586 = arith.subf %585, %493 : vector<4x1xf32>
    %587 = vector.broadcast %586 : vector<4x1xf32> to vector<4x16xf32>
    %588 = arith.mulf %587, %524 : vector<4x16xf32>
    %589 = vector.broadcast %572 : vector<4x1xf32> to vector<4x32xf32>
    %590 = arith.mulf %589, %584 : vector<4x32xf32>
    %591 = tpu.concatenate %588, %590, %2, %4 in 1 : vector<4x16xf32>, vector<4x32xf32>, vector<4x1xf32>, vector<4x7xf32> -> vector<4x56xf32>
    %cst_137 = arith.constant dense<0.000000e+00> : vector<4x65xf32>
    %592 = tpu.matmul %591, %1, %cst_137 {dimension_numbers = #tpu.dot_dimension_numbers<[1], [0], [0], [1], [0, 0, 1, 1], [], []>} : vector<4x56xf32>, vector<56x65xf32>, vector<4x65xf32> -> vector<4x65xf32>
    %593 = vector.extract_strided_slice %592 {offsets = [0, 0], sizes = [4, 16], strides = [1, 1]} : vector<4x65xf32> to vector<4x16xf32>
    %594 = arith.negf %593 : vector<4x16xf32>
    %595 = math.exp %594 : vector<4x16xf32>
    %cst_138 = arith.constant 1.000000e+00 : f32
    %596 = vector.broadcast %cst_138 : f32 to vector<4x16xf32>
    %597 = arith.addf %596, %595 : vector<4x16xf32>
    %598 = arith.divf %596, %597 : vector<4x16xf32>
    %599 = vector.extract_strided_slice %592 {offsets = [0, 16], sizes = [4, 16], strides = [1, 1]} : vector<4x65xf32> to vector<4x16xf32>
    %600 = arith.negf %599 : vector<4x16xf32>
    %601 = math.exp %600 : vector<4x16xf32>
    %cst_139 = arith.constant 1.000000e+00 : f32
    %602 = vector.broadcast %cst_139 : f32 to vector<4x16xf32>
    %603 = arith.addf %602, %601 : vector<4x16xf32>
    %604 = arith.divf %602, %603 : vector<4x16xf32>
    %605 = vector.extract_strided_slice %592 {offsets = [0, 32], sizes = [4, 16], strides = [1, 1]} : vector<4x65xf32> to vector<4x16xf32>
    %606 = arith.negf %605 : vector<4x16xf32>
    %607 = math.exp %606 : vector<4x16xf32>
    %cst_140 = arith.constant 1.000000e+00 : f32
    %608 = vector.broadcast %cst_140 : f32 to vector<4x16xf32>
    %609 = arith.addf %608, %607 : vector<4x16xf32>
    %610 = arith.divf %608, %609 : vector<4x16xf32>
    %611 = vector.extract_strided_slice %592 {offsets = [0, 48], sizes = [4, 16], strides = [1, 1]} : vector<4x65xf32> to vector<4x16xf32>
    %612 = math.tanh %611 : vector<4x16xf32>
    %613 = vector.extract_strided_slice %592 {offsets = [0, 64], sizes = [4, 1], strides = [1, 1]} : vector<4x65xf32> to vector<4x1xf32>
    %cst_141 = arith.constant 1.000000e+00 : f32
    %614 = vector.broadcast %cst_141 : f32 to vector<4x1xf32>
    %615 = arith.mulf %614, %613 : vector<4x1xf32>
    %cst_142 = arith.constant 1.000000e+00 : f32
    %616 = vector.broadcast %cst_142 : f32 to vector<4x1xf32>
    %617 = arith.addf %615, %616 : vector<4x1xf32>
    %cst_143 = arith.constant 5.000000e-01 : f32
    %618 = vector.broadcast %cst_143 : f32 to vector<4x1xf32>
    %619 = arith.mulf %617, %618 : vector<4x1xf32>
    %cst_144 = arith.constant 0.000000e+00 : f32
    %cst_145 = arith.constant 1.000000e+00 : f32
    %620 = vector.broadcast %cst_144 : f32 to vector<4x1xf32>
    %621 = arith.maximumf %620, %619 : vector<4x1xf32>
    %622 = vector.broadcast %cst_145 : f32 to vector<4x1xf32>
    %623 = arith.minimumf %622, %621 : vector<4x1xf32>
    %624 = arith.mulf %604, %612 : vector<4x16xf32>
    %cst_146 = arith.constant 1.000000e+00 : f32
    %625 = vector.broadcast %cst_146 : f32 to vector<4x1xf32>
    %626 = arith.subf %625, %493 : vector<4x1xf32>
    %627 = vector.broadcast %493 : vector<4x1xf32> to vector<4x16xf32>
    %628 = arith.mulf %627, %624 : vector<4x16xf32>
    %cst_147 = arith.constant 1.000000e+00 : f32
    %629 = vector.broadcast %cst_147 : f32 to vector<4x1xf32>
    %630 = arith.subf %629, %572 : vector<4x1xf32>
    %631 = arith.mulf %626, %630 : vector<4x1xf32>
    %632 = vector.broadcast %631 : vector<4x1xf32> to vector<4x16xf32>
    %633 = arith.mulf %632, %510 : vector<4x16xf32>
    %634 = arith.addf %628, %633 : vector<4x16xf32>
    %635 = arith.mulf %626, %572 : vector<4x1xf32>
    %636 = arith.mulf %598, %510 : vector<4x16xf32>
    %637 = arith.addf %636, %624 : vector<4x16xf32>
    %638 = vector.broadcast %635 : vector<4x1xf32> to vector<4x16xf32>
    %639 = arith.mulf %638, %637 : vector<4x16xf32>
    %640 = arith.addf %634, %639 : vector<4x16xf32>
    %641 = math.tanh %640 : vector<4x16xf32>
    %642 = arith.mulf %610, %641 : vector<4x16xf32>
    %643 = vector.broadcast %493 : vector<4x1xf32> to vector<4x16xf32>
    %644 = arith.mulf %643, %642 : vector<4x16xf32>
    %cst_148 = arith.constant 1.000000e+00 : f32
    %645 = vector.broadcast %cst_148 : f32 to vector<4x1xf32>
    %646 = arith.subf %645, %572 : vector<4x1xf32>
    %647 = arith.mulf %626, %646 : vector<4x1xf32>
    %648 = vector.broadcast %647 : vector<4x1xf32> to vector<4x16xf32>
    %649 = arith.mulf %648, %524 : vector<4x16xf32>
    %650 = arith.addf %644, %649 : vector<4x16xf32>
    %651 = arith.mulf %626, %572 : vector<4x1xf32>
    %652 = vector.broadcast %651 : vector<4x1xf32> to vector<4x16xf32>
    %653 = arith.mulf %652, %642 : vector<4x16xf32>
    %654 = arith.addf %650, %653 : vector<4x16xf32>
    %655 = vector.broadcast %623 : vector<4x1xf32> to vector<4x16xf32>
    %656 = arith.mulf %654, %655 : vector<4x16xf32>
    %657 = arith.index_cast %c4_i32 : i32 to index
    %c0_149 = arith.constant 0 : index
    %c0_150 = arith.constant 0 : index
    %658 = vector.load %arg3[%657, %c0_149, %c0_150] : memref<6x4x16xf32, #tpu.memory_space<vmem>>, vector<1x4x16xf32>
    %659 = vector.shape_cast %658 : vector<1x4x16xf32> to vector<4x16xf32>
    %660 = vector.shape_cast %656 : vector<4x16xf32> to vector<1x4x16xf32>
    tpu.vector_store %arg3[%657, %c0_149, %c0_150], %660 {strides = array<i32>} : memref<6x4x16xf32, #tpu.memory_space<vmem>>, vector<1x4x16xf32>,
    %c5_i32 = arith.constant 5 : i32
    %661 = arith.index_cast %c5_i32 : i32 to index
    %c0_151 = arith.constant 0 : index
    %c0_152 = arith.constant 0 : index
    %662 = vector.load %arg0[%661, %c0_151, %c0_152] : memref<6x4x8xf32, #tpu.memory_space<vmem>>, vector<1x4x8xf32>
    %663 = vector.shape_cast %662 : vector<1x4x8xf32> to vector<4x8xf32>
    %cst_153 = arith.constant 1.000000e+00 : f32
    %664 = vector.broadcast %cst_153 : f32 to vector<4x1xf32>
    %665 = arith.subf %664, %572 : vector<4x1xf32>
    %666 = vector.broadcast %665 : vector<4x1xf32> to vector<4x32xf32>
    %667 = arith.mulf %666, %584 : vector<4x32xf32>
    %668 = vector.broadcast %572 : vector<4x1xf32> to vector<4x16xf32>
    %669 = arith.mulf %668, %654 : vector<4x16xf32>
    %670 = tpu.concatenate %667, %669, %663, %2, %3 in 1 : vector<4x32xf32>, vector<4x16xf32>, vector<4x8xf32>, vector<4x1xf32>, vector<4x7xf32> -> vector<4x64xf32>
    %cst_154 = arith.constant dense<0.000000e+00> : vector<4x129xf32>
    %671 = tpu.matmul %670, %0, %cst_154 {dimension_numbers = #tpu.dot_dimension_numbers<[1], [0], [0], [1], [0, 0, 1, 1], [], []>} : vector<4x64xf32>, vector<64x129xf32>, vector<4x129xf32> -> vector<4x129xf32>
    %672 = vector.extract_strided_slice %671 {offsets = [0, 0], sizes = [4, 32], strides = [1, 1]} : vector<4x129xf32> to vector<4x32xf32>
    %673 = arith.negf %672 : vector<4x32xf32>
    %674 = math.exp %673 : vector<4x32xf32>
    %cst_155 = arith.constant 1.000000e+00 : f32
    %675 = vector.broadcast %cst_155 : f32 to vector<4x32xf32>
    %676 = arith.addf %675, %674 : vector<4x32xf32>
    %677 = arith.divf %675, %676 : vector<4x32xf32>
    %678 = vector.extract_strided_slice %671 {offsets = [0, 32], sizes = [4, 32], strides = [1, 1]} : vector<4x129xf32> to vector<4x32xf32>
    %679 = arith.negf %678 : vector<4x32xf32>
    %680 = math.exp %679 : vector<4x32xf32>
    %cst_156 = arith.constant 1.000000e+00 : f32
    %681 = vector.broadcast %cst_156 : f32 to vector<4x32xf32>
    %682 = arith.addf %681, %680 : vector<4x32xf32>
    %683 = arith.divf %681, %682 : vector<4x32xf32>
    %684 = vector.extract_strided_slice %671 {offsets = [0, 64], sizes = [4, 32], strides = [1, 1]} : vector<4x129xf32> to vector<4x32xf32>
    %685 = arith.negf %684 : vector<4x32xf32>
    %686 = math.exp %685 : vector<4x32xf32>
    %cst_157 = arith.constant 1.000000e+00 : f32
    %687 = vector.broadcast %cst_157 : f32 to vector<4x32xf32>
    %688 = arith.addf %687, %686 : vector<4x32xf32>
    %689 = arith.divf %687, %688 : vector<4x32xf32>
    %690 = vector.extract_strided_slice %671 {offsets = [0, 96], sizes = [4, 32], strides = [1, 1]} : vector<4x129xf32> to vector<4x32xf32>
    %691 = math.tanh %690 : vector<4x32xf32>
    %692 = vector.extract_strided_slice %671 {offsets = [0, 128], sizes = [4, 1], strides = [1, 1]} : vector<4x129xf32> to vector<4x1xf32>
    %cst_158 = arith.constant 1.000000e+00 : f32
    %693 = vector.broadcast %cst_158 : f32 to vector<4x1xf32>
    %694 = arith.mulf %693, %692 : vector<4x1xf32>
    %cst_159 = arith.constant 1.000000e+00 : f32
    %695 = vector.broadcast %cst_159 : f32 to vector<4x1xf32>
    %696 = arith.addf %694, %695 : vector<4x1xf32>
    %cst_160 = arith.constant 5.000000e-01 : f32
    %697 = vector.broadcast %cst_160 : f32 to vector<4x1xf32>
    %698 = arith.mulf %696, %697 : vector<4x1xf32>
    %cst_161 = arith.constant 0.000000e+00 : f32
    %cst_162 = arith.constant 1.000000e+00 : f32
    %699 = vector.broadcast %cst_161 : f32 to vector<4x1xf32>
    %700 = arith.maximumf %699, %698 : vector<4x1xf32>
    %701 = vector.broadcast %cst_162 : f32 to vector<4x1xf32>
    %702 = arith.minimumf %701, %700 : vector<4x1xf32>
    %703 = arith.mulf %683, %691 : vector<4x32xf32>
    %704 = vector.broadcast %572 : vector<4x1xf32> to vector<4x32xf32>
    %705 = arith.mulf %704, %703 : vector<4x32xf32>
    %cst_163 = arith.constant 1.000000e+00 : f32
    %706 = vector.broadcast %cst_163 : f32 to vector<4x1xf32>
    %707 = arith.subf %706, %572 : vector<4x1xf32>
    %708 = arith.mulf %677, %582 : vector<4x32xf32>
    %709 = arith.addf %708, %703 : vector<4x32xf32>
    %710 = vector.broadcast %707 : vector<4x1xf32> to vector<4x32xf32>
    %711 = arith.mulf %710, %709 : vector<4x32xf32>
    %712 = arith.addf %705, %711 : vector<4x32xf32>
    %713 = math.tanh %712 : vector<4x32xf32>
    %714 = arith.mulf %689, %713 : vector<4x32xf32>
    %cst_164 = arith.constant 1.000000e+00 : f32
    %715 = vector.broadcast %cst_164 : f32 to vector<4x1xf32>
    %716 = arith.subf %715, %623 : vector<4x1xf32>
    %717 = vector.broadcast %716 : vector<4x1xf32> to vector<4x16xf32>
    %718 = arith.mulf %717, %654 : vector<4x16xf32>
    %719 = vector.broadcast %702 : vector<4x1xf32> to vector<4x32xf32>
    %720 = arith.mulf %719, %714 : vector<4x32xf32>
    %721 = tpu.concatenate %718, %720, %2, %4 in 1 : vector<4x16xf32>, vector<4x32xf32>, vector<4x1xf32>, vector<4x7xf32> -> vector<4x56xf32>
    %cst_165 = arith.constant dense<0.000000e+00> : vector<4x65xf32>
    %722 = tpu.matmul %721, %1, %cst_165 {dimension_numbers = #tpu.dot_dimension_numbers<[1], [0], [0], [1], [0, 0, 1, 1], [], []>} : vector<4x56xf32>, vector<56x65xf32>, vector<4x65xf32> -> vector<4x65xf32>
    %723 = vector.extract_strided_slice %722 {offsets = [0, 0], sizes = [4, 16], strides = [1, 1]} : vector<4x65xf32> to vector<4x16xf32>
    %724 = arith.negf %723 : vector<4x16xf32>
    %725 = math.exp %724 : vector<4x16xf32>
    %cst_166 = arith.constant 1.000000e+00 : f32
    %726 = vector.broadcast %cst_166 : f32 to vector<4x16xf32>
    %727 = arith.addf %726, %725 : vector<4x16xf32>
    %728 = arith.divf %726, %727 : vector<4x16xf32>
    %729 = vector.extract_strided_slice %722 {offsets = [0, 16], sizes = [4, 16], strides = [1, 1]} : vector<4x65xf32> to vector<4x16xf32>
    %730 = arith.negf %729 : vector<4x16xf32>
    %731 = math.exp %730 : vector<4x16xf32>
    %cst_167 = arith.constant 1.000000e+00 : f32
    %732 = vector.broadcast %cst_167 : f32 to vector<4x16xf32>
    %733 = arith.addf %732, %731 : vector<4x16xf32>
    %734 = arith.divf %732, %733 : vector<4x16xf32>
    %735 = vector.extract_strided_slice %722 {offsets = [0, 32], sizes = [4, 16], strides = [1, 1]} : vector<4x65xf32> to vector<4x16xf32>
    %736 = arith.negf %735 : vector<4x16xf32>
    %737 = math.exp %736 : vector<4x16xf32>
    %cst_168 = arith.constant 1.000000e+00 : f32
    %738 = vector.broadcast %cst_168 : f32 to vector<4x16xf32>
    %739 = arith.addf %738, %737 : vector<4x16xf32>
    %740 = arith.divf %738, %739 : vector<4x16xf32>
    %741 = vector.extract_strided_slice %722 {offsets = [0, 48], sizes = [4, 16], strides = [1, 1]} : vector<4x65xf32> to vector<4x16xf32>
    %742 = math.tanh %741 : vector<4x16xf32>
    %743 = vector.extract_strided_slice %722 {offsets = [0, 64], sizes = [4, 1], strides = [1, 1]} : vector<4x65xf32> to vector<4x1xf32>
    %cst_169 = arith.constant 1.000000e+00 : f32
    %744 = vector.broadcast %cst_169 : f32 to vector<4x1xf32>
    %745 = arith.mulf %744, %743 : vector<4x1xf32>
    %cst_170 = arith.constant 1.000000e+00 : f32
    %746 = vector.broadcast %cst_170 : f32 to vector<4x1xf32>
    %747 = arith.addf %745, %746 : vector<4x1xf32>
    %cst_171 = arith.constant 5.000000e-01 : f32
    %748 = vector.broadcast %cst_171 : f32 to vector<4x1xf32>
    %749 = arith.mulf %747, %748 : vector<4x1xf32>
    %cst_172 = arith.constant 0.000000e+00 : f32
    %cst_173 = arith.constant 1.000000e+00 : f32
    %750 = vector.broadcast %cst_172 : f32 to vector<4x1xf32>
    %751 = arith.maximumf %750, %749 : vector<4x1xf32>
    %752 = vector.broadcast %cst_173 : f32 to vector<4x1xf32>
    %753 = arith.minimumf %752, %751 : vector<4x1xf32>
    %754 = arith.mulf %734, %742 : vector<4x16xf32>
    %cst_174 = arith.constant 1.000000e+00 : f32
    %755 = vector.broadcast %cst_174 : f32 to vector<4x1xf32>
    %756 = arith.subf %755, %623 : vector<4x1xf32>
    %757 = vector.broadcast %623 : vector<4x1xf32> to vector<4x16xf32>
    %758 = arith.mulf %757, %754 : vector<4x16xf32>
    %cst_175 = arith.constant 1.000000e+00 : f32
    %759 = vector.broadcast %cst_175 : f32 to vector<4x1xf32>
    %760 = arith.subf %759, %702 : vector<4x1xf32>
    %761 = arith.mulf %756, %760 : vector<4x1xf32>
    %762 = vector.broadcast %761 : vector<4x1xf32> to vector<4x16xf32>
    %763 = arith.mulf %762, %640 : vector<4x16xf32>
    %764 = arith.addf %758, %763 : vector<4x16xf32>
    %765 = arith.mulf %756, %702 : vector<4x1xf32>
    %766 = arith.mulf %728, %640 : vector<4x16xf32>
    %767 = arith.addf %766, %754 : vector<4x16xf32>
    %768 = vector.broadcast %765 : vector<4x1xf32> to vector<4x16xf32>
    %769 = arith.mulf %768, %767 : vector<4x16xf32>
    %770 = arith.addf %764, %769 : vector<4x16xf32>
    %771 = math.tanh %770 : vector<4x16xf32>
    %772 = arith.mulf %740, %771 : vector<4x16xf32>
    %773 = vector.broadcast %623 : vector<4x1xf32> to vector<4x16xf32>
    %774 = arith.mulf %773, %772 : vector<4x16xf32>
    %cst_176 = arith.constant 1.000000e+00 : f32
    %775 = vector.broadcast %cst_176 : f32 to vector<4x1xf32>
    %776 = arith.subf %775, %702 : vector<4x1xf32>
    %777 = arith.mulf %756, %776 : vector<4x1xf32>
    %778 = vector.broadcast %777 : vector<4x1xf32> to vector<4x16xf32>
    %779 = arith.mulf %778, %654 : vector<4x16xf32>
    %780 = arith.addf %774, %779 : vector<4x16xf32>
    %781 = arith.mulf %756, %702 : vector<4x1xf32>
    %782 = vector.broadcast %781 : vector<4x1xf32> to vector<4x16xf32>
    %783 = arith.mulf %782, %772 : vector<4x16xf32>
    %784 = arith.addf %780, %783 : vector<4x16xf32>
    %785 = vector.broadcast %753 : vector<4x1xf32> to vector<4x16xf32>
    %786 = arith.mulf %784, %785 : vector<4x16xf32>
    %787 = arith.index_cast %c5_i32 : i32 to index
    %c0_177 = arith.constant 0 : index
    %c0_178 = arith.constant 0 : index
    %788 = vector.load %arg3[%787, %c0_177, %c0_178] : memref<6x4x16xf32, #tpu.memory_space<vmem>>, vector<1x4x16xf32>
    %789 = vector.shape_cast %788 : vector<1x4x16xf32> to vector<4x16xf32>
    %790 = vector.shape_cast %786 : vector<4x16xf32> to vector<1x4x16xf32>
    tpu.vector_store %arg3[%787, %c0_177, %c0_178], %790 {strides = array<i32>} : memref<6x4x16xf32, #tpu.memory_space<vmem>>, vector<1x4x16xf32>,
    %c6_i32 = arith.constant 6 : i32
    return
  }
}

</mosaic_0001>

<llo_original>
// kernel: tpu_custom_call.1
$region0: #{tpu_custom_call.1}
  #allocation0 [shape = 'u32[]', space=smem, size = 0x4, offset = 0x4, fixed_abs, tag = 'smem constant byte address 0x4 - core index']
  #allocation1 [shape = 'u32[144,128]{1,0:T(1,128)}', space=vmem, size = 0x12000, scoped, tag = 'internal scratch']
  %s0 = inlined_call_operand.hbm [shape: f32[6,4,8], index: 0, kind: input, shape index: {}]
  %s1 = inlined_call_operand.hbm [shape: f32[64,129], index: 1, kind: input, shape index: {}]
  %s2 = inlined_call_operand.hbm [shape: f32[56,65], index: 2, kind: input, shape index: {}]
  %s3 = inlined_call_operand.hbm [shape: f32[6,4,16], index: 3, kind: output, shape index: {}]
  %s4 = sld [smem:[#allocation0]]
  $region34: #{tpu_custom_call.1} parent=0
    _
  %s6 = ssub.s32 1, %s4
  %s7 = scalar_select 0, %s6, %s4
  $region1: #{tpu_custom_call.1} parent=0
    #allocation2 [shape = 'u8[12288]{0}', space=vmem, size = 0x3000, scoped, tag = 'input window, operand 0, single buffered']
    #allocation3 [shape = 's32[1]{0}', space=sflag, size = 0x4, scoped, tag = 'scoped memory for tpu_custom_call.1']
    #allocation4 [shape = 's32[1]{0}', space=sflag, size = 0x4, scoped, tag = 'scoped memory for tpu_custom_call.1']
    #allocation5 [shape = 'u8[65536]{0}', space=vmem, size = 0x10000, scoped, tag = 'input window, operand 1, single buffered']
    #allocation6 [shape = 's32[1]{0}', space=sflag, size = 0x4, scoped, tag = 'scoped memory for tpu_custom_call.1']
    #allocation7 [shape = 'u8[28672]{0}', space=vmem, size = 0x7000, scoped, tag = 'input window, operand 2, single buffered']
    #allocation8 [shape = 'u8[12288]{0}', space=vmem, size = 0x3000, scoped, tag = 'output window, operand 0, single buffered']
    %8 = vsyncpa [#allocation3], 0
    %9 = vsyncpa [#allocation6], 0
    %10 = vsyncpa [#allocation4], 0
    // Predicated region
    $region2: #{tpu_custom_call.1} parent=1 // pred_check
      _
    $region3: #{tpu_custom_call.1} parent=1 // pred_check_branch
      %12 = sbr.rel (0) target = $region5
    $region4: #{tpu_custom_call.1} parent=1 // pred_region
      %s14 = ssub.s32 384, 384
      %15 = vsyncadd [#allocation3], %s14
      %s16 = sshll.u32 [#allocation2], 4
      %s17 = int_to_ptr.vmem [resolvable:$true] %s16
      %22 = dma.hbm_to_vmem [thread:$0]  %s0, 384, %s17, [#allocation3], 64, 64, 4
    $region5: #{tpu_custom_call.1} parent=1 // pred_fallthru
      _
    // Predicated region
    $region6: #{tpu_custom_call.1} parent=1 // pred_check
      _
    $region7: #{tpu_custom_call.1} parent=1 // pred_check_branch
      %24 = sbr.rel (0) target = $region9
    $region8: #{tpu_custom_call.1} parent=1 // pred_region
      %s26 = ssub.s32 2048, 2048
      %27 = vsyncadd [#allocation6], %s26
      %s28 = sshll.u32 [#allocation5], 4
      %s29 = int_to_ptr.vmem [resolvable:$true] %s28
      %34 = dma.hbm_to_vmem [thread:$0]  %s1, 2048, %s29, [#allocation6], 256, 256, 16
    $region9: #{tpu_custom_call.1} parent=1 // pred_fallthru
      _
    // Predicated region
    $region10: #{tpu_custom_call.1} parent=1 // pred_check
      _
    $region11: #{tpu_custom_call.1} parent=1 // pred_check_branch
      %36 = sbr.rel (0) target = $region13
    $region12: #{tpu_custom_call.1} parent=1 // pred_region
      %s38 = ssub.s32 896, 896
      %39 = vsyncadd [#allocation6], %s38
      %s40 = sshll.u32 [#allocation7], 4
      %s41 = int_to_ptr.vmem [resolvable:$true] %s40
      %46 = dma.hbm_to_vmem [thread:$0]  %s2, 896, %s41, [#allocation6], 128, 128, 8
    $region13: #{tpu_custom_call.1} parent=1 // pred_fallthru
      _
    // Predicated region
    $region14: #{tpu_custom_call.1} parent=1 // pred_check
      _
    $region15: #{tpu_custom_call.1} parent=1 // pred_check_branch
      %48 = sbr.rel (0) target = $region17
    $region16: #{tpu_custom_call.1} parent=1 // pred_region
      %49 = dma.done [#allocation3], 384
    $region17: #{tpu_custom_call.1} parent=1 // pred_fallthru
      _
    // Predicated region
    $region18: #{tpu_custom_call.1} parent=1 // pred_check
      _
    $region19: #{tpu_custom_call.1} parent=1 // pred_check_branch
      %51 = sbr.rel (0) target = $region21
    $region20: #{tpu_custom_call.1} parent=1 // pred_region
      %52 = dma.done [#allocation6], 2048
    $region21: #{tpu_custom_call.1} parent=1 // pred_fallthru
      _
    // Predicated region
    $region22: #{tpu_custom_call.1} parent=1 // pred_check
      _
    $region23: #{tpu_custom_call.1} parent=1 // pred_check_branch
      %54 = sbr.rel (0) target = $region25
    $region24: #{tpu_custom_call.1} parent=1 // pred_region
      %55 = dma.done [#allocation6], 896
    $region25: #{tpu_custom_call.1} parent=1 // pred_fallthru
      _
    %v56 = vld [vmem:[#allocation5] sm:$0xff]
    %v57 = vld [vmem:[#allocation5 + $0x8] sm:$0xff]
    %v58 = vld [vmem:[#allocation5 + $0x10] sm:$0xff]
    %v59 = vld [vmem:[#allocation5 + $0x18] sm:$0xff]
    %v60 = vld [vmem:[#allocation5 + $0x20] sm:$0xff]
    %v61 = vld [vmem:[#allocation5 + $0x28] sm:$0xff]
    %v62 = vld [vmem:[#allocation5 + $0x30] sm:$0xff]
    %v63 = vld [vmem:[#allocation5 + $0x38] sm:$0xff]
    %v64 = vld [vmem:[#allocation5 + $0x40] sm:$0xff]
    %v65 = vld [vmem:[#allocation5 + $0x48] sm:$0xff]
    %v66 = vld [vmem:[#allocation5 + $0x50] sm:$0xff]
    %v67 = vld [vmem:[#allocation5 + $0x58] sm:$0xff]
    %v68 = vld [vmem:[#allocation5 + $0x60] sm:$0xff]
    %v69 = vld [vmem:[#allocation5 + $0x68] sm:$0xff]
    %v70 = vld [vmem:[#allocation5 + $0x70] sm:$0xff]
    %v71 = vld [vmem:[#allocation5 + $0x78] sm:$0xff]
    %v72 = vld [vmem:[#allocation7] sm:$0xff]
    %v73 = vld [vmem:[#allocation7 + $0x8] sm:$0xff]
    %v74 = vld [vmem:[#allocation7 + $0x10] sm:$0xff]
    %v75 = vld [vmem:[#allocation7 + $0x18] sm:$0xff]
    %v76 = vld [vmem:[#allocation7 + $0x20] sm:$0xff]
    %v77 = vld [vmem:[#allocation7 + $0x28] sm:$0xff]
    %v78 = vld [vmem:[#allocation7 + $0x30] sm:$0xff]
    %v79 = vld [vmem:[#allocation2] sm:$0xf]
    %81 = vrot.lane.b32.xlu0 %v79, 48
    %v82 = vpop.permute.xlu0 %81
    %vm84 = vcmask 392192
    %v85 = vsel %vm84, 0.0, %v82
    %vm86 = vcmask 457728
    %v87 = vsel %vm86, %v85, 1.0
    %vm88 = vcmask 465920
    %v89 = vsel %vm88, %v87, 0.0
    %vm90 = vcmask 523264
    %v92 = vsel %vm90, %v89, 0
    %94 = vmatprep.subr.mxu0 %v57
    %95 = vmatpush1.msra.mxu0 %v56
    %96 = vmatprep.subr.mxu0 %v59
    %97 = vmatpush1.msra.mxu0 %v58
    %98 = vmatprep.subr.mxu0 %v61
    %99 = vmatpush1.msra.mxu0 %v60
    %100 = vmatprep.subr.mxu0 %v63
    %101 = vmatpush1.msra.mxu0 %v62
    %102 = vmatprep.subr.mxu0 %v65
    %103 = vmatpush1.msra.mxu0 %v64
    %104 = vmatprep.subr.mxu0 %v67
    %105 = vmatpush1.msra.mxu0 %v66
    %106 = vmatprep.subr.mxu0 %v69
    %107 = vmatpush1.msra.mxu0 %v68
    %108 = vmatprep.subr.mxu0 %v71
    %109 = vmatpush1.msra.mxu0 %v70
    %110 = vmatprep.subr.mxu0 0.0
    %111 = vmatpush1.msra.mxu0 0.0
    %112 = vmatprep.subr.mxu0 0.0
    %113 = vmatpush1.msra.mxu0 0.0
    %114 = vmatprep.subr.mxu0 0.0
    %115 = vmatpush1.msra.mxu0 0.0
    %116 = vmatprep.subr.mxu0 0.0
    %117 = vmatpush1.msra.mxu0 0.0
    %118 = vmatprep.subr.mxu0 0.0
    %119 = vmatpush1.msra.mxu0 0.0
    %120 = vmatprep.subr.mxu0 0.0
    %121 = vmatpush1.msra.mxu0 0.0
    %122 = vmatprep.subr.mxu0 0.0
    %123 = vmatpush1.msra.mxu0 0.0
    %124 = vmatprep.subr.mxu0 0.0
    %125 = vmatpush1.msra.mxu0 0.0
    %126 = vmatprep.subr.mxu0 0.0
    %127 = vmatpush1.msra.mxu0 0.0
    %128 = vmatprep.subr.mxu0 0.0
    %129 = vmatpush1.msra.mxu0 0.0
    %130 = vmatprep.subr.mxu0 0.0
    %131 = vmatpush1.msra.mxu0 0.0
    %132 = vmatprep.subr.mxu0 0.0
    %133 = vmatpush1.msra.mxu0 0.0
    %134 = vmatprep.subr.mxu0 0.0
    %135 = vmatpush1.msra.mxu0 0.0
    %136 = vmatprep.subr.mxu0 0.0
    %137 = vmatpush1.msra.mxu0 0.0
    %138 = vmatprep.subr.mxu0 0.0
    %139 = vmatpush1.msra.mxu0 0.0
    %140 = vmatprep.subr.mxu0 0.0
    %141 = vmatpush1.msra.mxu0 0.0
    %142 = vmatprep.subr.mxu0 0.0
    %143 = vmatpush1.msra.mxu0 0.0
    %144 = vmatprep.subr.mxu0 0.0
    %145 = vmatpush1.msra.mxu0 0.0
    %146 = vmatprep.subr.mxu0 0.0
    %147 = vmatpush1.msra.mxu0 0.0
    %148 = vmatprep.subr.mxu0 0.0
    %149 = vmatpush1.msra.mxu0 0.0
    %150 = vmatprep.subr.mxu0 0.0
    %151 = vmatpush1.msra.mxu0 0.0
    %152 = vmatprep.subr.mxu0 0.0
    %153 = vmatpush1.msra.mxu0 0.0
    %154 = vmatprep.subr.mxu0 0.0
    %155 = vmatpush1.msra.mxu0 0.0
    %156 = vmatprep.subr.mxu0 0.0
    %157 = vmatpush1.msra.mxu0 0.0
    %158 = vmatprep.mubr.f32.mxu0 0.0
    %159 = vmatmul.mubr.f32.gmra.mrb[0].mxu0 %v92
    %v160 = vpop.f32.mrb[0].mxu0
    %v161 = vadd.f32 0.0, %v160
    %v162 = vpop.f32.mrb[0].mxu0
    %v163 = vadd.f32 0.0, %v162
    %164 = vdwg.mxu0
    %v165 = vxor.u32 %v161, 2147483648
    %v166 = vmul.f32 %v165, 1.442695
    %v167 = vpow.pop %v166
    %v168 = vadd.f32 %v167, 1.0
    %v169 = vrcp.pop %v168
    %v170 = vmul.f32 1.0, %v169
    %v171 = vtanh.pop %v161
    %v172 = vadd.f32 %v163, 1.0
    %v173 = vmul.f32 %v172, 0.5
    %v174 = vmax.f32 %v173, 0.0
    %v175 = vmin.f32 %v174, 1.0
    %177 = vrot.lane.b32.xlu0 %v171, 64
    %v178 = vpop.permute.xlu0 %177
    %v180 = vmul.f32 %v170, %v178
    %v181 = vmul.f32 %v180, 0.0
    %v182 = vmul.f32 %v170, 0.0
    %184 = vrot.lane.b32.xlu0 %v180, 96
    %v185 = vpop.permute.xlu0 %184
    %v187 = vadd.f32 %v182, %v185
    %189 = vrot.lane.b32.xlu0 %v187, 32
    %v190 = vpop.permute.xlu0 %189
    %v192 = vadd.f32 %v181, %v190
    %v193 = vtanh.pop %v192
    %195 = vrot.lane.b32.xlu0 %v193, 32
    %v196 = vpop.permute.xlu0 %195
    %v198 = vmul.f32 %v170, %v196
    %200 = vset.pattern.permute.xlu0 0
    %201 = vperm.xlu0 %200, %v175
    %v202 = vpop.permute.xlu0 %201
    %v204 = vmul.f32 %v202, %v198
    %206 = vrot.lane.b32.xlu0 %v204, 80
    %v207 = vpop.permute.xlu0 %206
    %vm209 = vcmask 130048
    %v210 = vsel %vm209, 0.0, %v207
    %v211 = vsel %vm84, %v210, 1.0
    %vm212 = vcmask 400384
    %v213 = vsel %vm212, %v211, 0.0
    %v215 = vsel %vm86, %v213, 0
    %217 = vmatprep.subr.mxu0 0.0
    %218 = vmatpush1.msra.mxu0 %v72
    %219 = vmatprep.subr.mxu0 0.0
    %220 = vmatpush1.msra.mxu0 %v73
    %221 = vmatprep.subr.mxu0 0.0
    %222 = vmatpush1.msra.mxu0 %v74
    %223 = vmatprep.subr.mxu0 0.0
    %224 = vmatpush1.msra.mxu0 %v75
    %225 = vmatprep.subr.mxu0 0.0
    %226 = vmatpush1.msra.mxu0 %v76
    %227 = vmatprep.subr.mxu0 0.0
    %228 = vmatpush1.msra.mxu0 %v77
    %229 = vmatprep.subr.mxu0 0.0
    %230 = vmatpush1.msra.mxu0 %v78
    %231 = vmatprep.subr.mxu0 0.0
    %232 = vmatpush1.msra.mxu0 0.0
    %233 = vmatprep.subr.mxu0 0.0
    %234 = vmatpush1.msra.mxu0 0.0
    %235 = vmatprep.subr.mxu0 0.0
    %236 = vmatpush1.msra.mxu0 0.0
    %237 = vmatprep.subr.mxu0 0.0
    %238 = vmatpush1.msra.mxu0 0.0
    %239 = vmatprep.subr.mxu0 0.0
    %240 = vmatpush1.msra.mxu0 0.0
    %241 = vmatprep.subr.mxu0 0.0
    %242 = vmatpush1.msra.mxu0 0.0
    %243 = vmatprep.subr.mxu0 0.0
    %244 = vmatpush1.msra.mxu0 0.0
    %245 = vmatprep.subr.mxu0 0.0
    %246 = vmatpush1.msra.mxu0 0.0
    %247 = vmatprep.subr.mxu0 0.0
    %248 = vmatpush1.msra.mxu0 0.0
    %249 = vmatprep.subr.mxu0 0.0
    %250 = vmatpush1.msra.mxu0 0.0
    %251 = vmatprep.subr.mxu0 0.0
    %252 = vmatpush1.msra.mxu0 0.0
    %253 = vmatprep.subr.mxu0 0.0
    %254 = vmatpush1.msra.mxu0 0.0
    %255 = vmatprep.subr.mxu0 0.0
    %256 = vmatpush1.msra.mxu0 0.0
    %257 = vmatprep.subr.mxu0 0.0
    %258 = vmatpush1.msra.mxu0 0.0
    %259 = vmatprep.subr.mxu0 0.0
    %260 = vmatpush1.msra.mxu0 0.0
    %261 = vmatprep.subr.mxu0 0.0
    %262 = vmatpush1.msra.mxu0 0.0
    %263 = vmatprep.subr.mxu0 0.0
    %264 = vmatpush1.msra.mxu0 0.0
    %265 = vmatprep.subr.mxu0 0.0
    %266 = vmatpush1.msra.mxu0 0.0
    %267 = vmatprep.subr.mxu0 0.0
    %268 = vmatpush1.msra.mxu0 0.0
    %269 = vmatprep.subr.mxu0 0.0
    %270 = vmatpush1.msra.mxu0 0.0
    %271 = vmatprep.subr.mxu0 0.0
    %272 = vmatpush1.msra.mxu0 0.0
    %273 = vmatprep.subr.mxu0 0.0
    %274 = vmatpush1.msra.mxu0 0.0
    %275 = vmatprep.subr.mxu0 0.0
    %276 = vmatpush1.msra.mxu0 0.0
    %277 = vmatprep.subr.mxu0 0.0
    %278 = vmatpush1.msra.mxu0 0.0
    %279 = vmatprep.subr.mxu0 0.0
    %280 = vmatpush1.msra.mxu0 0.0
    %281 = vmatprep.mubr.f32.mxu0 0.0
    %282 = vmatmul.mubr.f32.gmra.mrb[0].mxu0 %v215
    %v283 = vpop.f32.mrb[0].mxu0
    %v284 = vadd.f32 0.0, %v283
    %v285 = vpop.f32.mrb[0].mxu0
    %286 = vdwg.mxu0
    %v287 = vxor.u32 %v284, 2147483648
    %v288 = vmul.f32 %v287, 1.442695
    %v289 = vpow.pop %v288
    %v290 = vadd.f32 %v289, 1.0
    %v291 = vrcp.pop %v290
    %v292 = vmul.f32 1.0, %v291
    %v293 = vtanh.pop %v284
    %v294 = vadd.f32 %v284, 1.0
    %v295 = vmul.f32 %v294, 0.5
    %v296 = vmax.f32 %v295, 0.0
    %v297 = vmin.f32 %v296, 1.0
    %299 = vrot.lane.b32.xlu0 %v293, 96
    %v300 = vpop.permute.xlu0 %299
    %v302 = vmul.f32 %v292, %v300
    %v303 = vmul.f32 %v302, 0.0
    %v304 = vsub.f32 1.0, %v175
    %306 = vset.pattern.permute.xlu0 0
    %307 = vperm.xlu0 %306, %v304
    %v308 = vpop.permute.xlu0 %307
    %v310 = vmul.f32 %v308, 0.0
    %v311 = vadd.f32 %v303, %v310
    %v312 = vmul.f32 %v292, 0.0
    %314 = vrot.lane.b32.xlu0 %v302, 112
    %v315 = vpop.permute.xlu0 %314
    %v317 = vadd.f32 %v312, %v315
    %v318 = vmul.f32 %v202, %v317
    %320 = vrot.lane.b32.xlu0 %v318, 16
    %v321 = vpop.permute.xlu0 %320
    %v323 = vadd.f32 %v311, %v321
    %v324 = vtanh.pop %v323
    %326 = vrot.lane.b32.xlu0 %v324, 16
    %v327 = vpop.permute.xlu0 %326
    %v329 = vmul.f32 %v292, %v327
    %v330 = vmul.f32 %v329, 0.0
    %v331 = vadd.f32 %v330, %v310
    %v332 = vmul.f32 %v202, %v329
    %v333 = vadd.f32 %v331, %v332
    %335 = vset.pattern.permute.xlu0 64
    %336 = vperm.xlu0 %335, %v297
    %v337 = vpop.permute.xlu0 %336
    %v339 = vmul.f32 %v333, %v337
    %341 = vrot.lane.b32.xlu0 %v339, 96
    %v342 = vpop.permute.xlu0 %341
    %vm344 = vcmask 125952
    %345 = vst.msk [vmem:[#allocation8] sm:$0xf] %vm344, %v342
    %s346 = scalar_lea.vmem [#allocation2], 4
    %v347 = vld [vmem:[%s346] sm:$0xf]
    %v348 = vmul.f32 %v308, %v198
    %v349 = vmul.f32 %v202, %v333
    %351 = vrot.lane.b32.xlu0 %v348, 64
    %v352 = vpop.permute.xlu0 %351
    %355 = vrot.lane.b32.xlu0 %v347, 48
    %v356 = vpop.permute.xlu0 %355
    %vm358 = vcmask 261120
    %v359 = vsel %vm358, %v352, %v349
    %v360 = vsel %vm84, %v359, %v356
    %v361 = vsel %vm86, %v360, 1.0
    %v362 = vsel %vm88, %v361, 0.0
    %v364 = vsel %vm90, %v362, 0
    %366 = vmatprep.subr.mxu0 %v57
    %367 = vmatpush1.msra.mxu0 %v56
    %368 = vmatprep.subr.mxu0 %v59
    %369 = vmatpush1.msra.mxu0 %v58
    %370 = vmatprep.subr.mxu0 %v61
    %371 = vmatpush1.msra.mxu0 %v60
    %372 = vmatprep.subr.mxu0 %v63
    %373 = vmatpush1.msra.mxu0 %v62
    %374 = vmatprep.subr.mxu0 %v65
    %375 = vmatpush1.msra.mxu0 %v64
    %376 = vmatprep.subr.mxu0 %v67
    %377 = vmatpush1.msra.mxu0 %v66
    %378 = vmatprep.subr.mxu0 %v69
    %379 = vmatpush1.msra.mxu0 %v68
    %380 = vmatprep.subr.mxu0 %v71
    %381 = vmatpush1.msra.mxu0 %v70
    %382 = vmatprep.subr.mxu0 0.0
    %383 = vmatpush1.msra.mxu0 0.0
    %384 = vmatprep.subr.mxu0 0.0
    %385 = vmatpush1.msra.mxu0 0.0
    %386 = vmatprep.subr.mxu0 0.0
    %387 = vmatpush1.msra.mxu0 0.0
    %388 = vmatprep.subr.mxu0 0.0
    %389 = vmatpush1.msra.mxu0 0.0
    %390 = vmatprep.subr.mxu0 0.0
    %391 = vmatpush1.msra.mxu0 0.0
    %392 = vmatprep.subr.mxu0 0.0
    %393 = vmatpush1.msra.mxu0 0.0
    %394 = vmatprep.subr.mxu0 0.0
    %395 = vmatpush1.msra.mxu0 0.0
    %396 = vmatprep.subr.mxu0 0.0
    %397 = vmatpush1.msra.mxu0 0.0
    %398 = vmatprep.subr.mxu0 0.0
    %399 = vmatpush1.msra.mxu0 0.0
    %400 = vmatprep.subr.mxu0 0.0
    %401 = vmatpush1.msra.mxu0 0.0
    %402 = vmatprep.subr.mxu0 0.0
    %403 = vmatpush1.msra.mxu0 0.0
    %404 = vmatprep.subr.mxu0 0.0
    %405 = vmatpush1.msra.mxu0 0.0
    %406 = vmatprep.subr.mxu0 0.0
    %407 = vmatpush1.msra.mxu0 0.0
    %408 = vmatprep.subr.mxu0 0.0
    %409 = vmatpush1.msra.mxu0 0.0
    %410 = vmatprep.subr.mxu0 0.0
    %411 = vmatpush1.msra.mxu0 0.0
    %412 = vmatprep.subr.mxu0 0.0
    %413 = vmatpush1.msra.mxu0 0.0
    %414 = vmatprep.subr.mxu0 0.0
    %415 = vmatpush1.msra.mxu0 0.0
    %416 = vmatprep.subr.mxu0 0.0
    %417 = vmatpush1.msra.mxu0 0.0
    %418 = vmatprep.subr.mxu0 0.0
    %419 = vmatpush1.msra.mxu0 0.0
    %420 = vmatprep.subr.mxu0 0.0
    %421 = vmatpush1.msra.mxu0 0.0
    %422 = vmatprep.subr.mxu0 0.0
    %423 = vmatpush1.msra.mxu0 0.0
    %424 = vmatprep.subr.mxu0 0.0
    %425 = vmatpush1.msra.mxu0 0.0
    %426 = vmatprep.subr.mxu0 0.0
    %427 = vmatpush1.msra.mxu0 0.0
    %428 = vmatprep.subr.mxu0 0.0
    %429 = vmatpush1.msra.mxu0 0.0
    %430 = vmatprep.mubr.f32.mxu0 0.0
    %431 = vmatmul.mubr.f32.gmra.mrb[0].mxu0 %v364
    %v432 = vpop.f32.mrb[0].mxu0
    %v433 = vadd.f32 0.0, %v432
    %v434 = vpop.f32.mrb[0].mxu0
    %v435 = vadd.f32 0.0, %v434
    %436 = vdwg.mxu0
    %v437 = vxor.u32 %v433, 2147483648
    %v438 = vmul.f32 %v437, 1.442695
    %v439 = vpow.pop %v438
    %v440 = vadd.f32 %v439, 1.0
    %v441 = vrcp.pop %v440
    %v442 = vmul.f32 1.0, %v441
    %v443 = vtanh.pop %v433
    %v444 = vadd.f32 %v435, 1.0
    %v445 = vmul.f32 %v444, 0.5
    %v446 = vmax.f32 %v445, 0.0
    %v447 = vmin.f32 %v446, 1.0
    %449 = vrot.lane.b32.xlu0 %v443, 64
    %v450 = vpop.permute.xlu0 %449
    %v452 = vmul.f32 %v442, %v450
    %v453 = vmul.f32 %v202, %v452
    %455 = vrot.lane.b32.xlu0 %v192, 96
    %v456 = vpop.permute.xlu0 %455
    %v458 = vmul.f32 %v442, %v456
    %460 = vrot.lane.b32.xlu0 %v452, 96
    %v461 = vpop.permute.xlu0 %460
    %v463 = vadd.f32 %v458, %v461
    %v464 = vmul.f32 %v308, %v463
    %466 = vrot.lane.b32.xlu0 %v464, 32
    %v467 = vpop.permute.xlu0 %466
    %v469 = vadd.f32 %v453, %v467
    %v470 = vtanh.pop %v469
    %472 = vrot.lane.b32.xlu0 %v470, 32
    %v473 = vpop.permute.xlu0 %472
    %v475 = vmul.f32 %v442, %v473
    %v476 = vsub.f32 1.0, %v297
    %478 = vset.pattern.permute.xlu0 64
    %479 = vperm.xlu0 %478, %v476
    %v480 = vpop.permute.xlu0 %479
    %v482 = vmul.f32 %v480, %v333
    %484 = vset.pattern.permute.xlu0 0
    %485 = vperm.xlu0 %484, %v447
    %v486 = vpop.permute.xlu0 %485
    %v488 = vmul.f32 %v486, %v475
    %490 = vrot.lane.b32.xlu0 %v482, 96
    %v491 = vpop.permute.xlu0 %490
    %494 = vrot.lane.b32.xlu0 %v488, 80
    %v495 = vpop.permute.xlu0 %494
    %v497 = vsel %vm209, %v491, %v495
    %v498 = vsel %vm84, %v497, 1.0
    %v499 = vsel %vm212, %v498, 0.0
    %v501 = vsel %vm86, %v499, 0
    %503 = vmatprep.subr.mxu0 0.0
    %504 = vmatpush1.msra.mxu0 %v72
    %505 = vmatprep.subr.mxu0 0.0
    %506 = vmatpush1.msra.mxu0 %v73
    %507 = vmatprep.subr.mxu0 0.0
    %508 = vmatpush1.msra.mxu0 %v74
    %509 = vmatprep.subr.mxu0 0.0
    %510 = vmatpush1.msra.mxu0 %v75
    %511 = vmatprep.subr.mxu0 0.0
    %512 = vmatpush1.msra.mxu0 %v76
    %513 = vmatprep.subr.mxu0 0.0
    %514 = vmatpush1.msra.mxu0 %v77
    %515 = vmatprep.subr.mxu0 0.0
    %516 = vmatpush1.msra.mxu0 %v78
    %517 = vmatprep.subr.mxu0 0.0
    %518 = vmatpush1.msra.mxu0 0.0
    %519 = vmatprep.subr.mxu0 0.0
    %520 = vmatpush1.msra.mxu0 0.0
    %521 = vmatprep.subr.mxu0 0.0
    %522 = vmatpush1.msra.mxu0 0.0
    %523 = vmatprep.subr.mxu0 0.0
    %524 = vmatpush1.msra.mxu0 0.0
    %525 = vmatprep.subr.mxu0 0.0
    %526 = vmatpush1.msra.mxu0 0.0
    %527 = vmatprep.subr.mxu0 0.0
    %528 = vmatpush1.msra.mxu0 0.0
    %529 = vmatprep.subr.mxu0 0.0
    %530 = vmatpush1.msra.mxu0 0.0
    %531 = vmatprep.subr.mxu0 0.0
    %532 = vmatpush1.msra.mxu0 0.0
    %533 = vmatprep.subr.mxu0 0.0
    %534 = vmatpush1.msra.mxu0 0.0
    %535 = vmatprep.subr.mxu0 0.0
    %536 = vmatpush1.msra.mxu0 0.0
    %537 = vmatprep.subr.mxu0 0.0
    %538 = vmatpush1.msra.mxu0 0.0
    %539 = vmatprep.subr.mxu0 0.0
    %540 = vmatpush1.msra.mxu0 0.0
    %541 = vmatprep.subr.mxu0 0.0
    %542 = vmatpush1.msra.mxu0 0.0
    %543 = vmatprep.subr.mxu0 0.0
    %544 = vmatpush1.msra.mxu0 0.0
    %545 = vmatprep.subr.mxu0 0.0
    %546 = vmatpush1.msra.mxu0 0.0
    %547 = vmatprep.subr.mxu0 0.0
    %548 = vmatpush1.msra.mxu0 0.0
    %549 = vmatprep.subr.mxu0 0.0
    %550 = vmatpush1.msra.mxu0 0.0
    %551 = vmatprep.subr.mxu0 0.0
    %552 = vmatpush1.msra.mxu0 0.0
    %553 = vmatprep.subr.mxu0 0.0
    %554 = vmatpush1.msra.mxu0 0.0
    %555 = vmatprep.subr.mxu0 0.0
    %556 = vmatpush1.msra.mxu0 0.0
    %557 = vmatprep.subr.mxu0 0.0
    %558 = vmatpush1.msra.mxu0 0.0
    %559 = vmatprep.subr.mxu0 0.0
    %560 = vmatpush1.msra.mxu0 0.0
    %561 = vmatprep.subr.mxu0 0.0
    %562 = vmatpush1.msra.mxu0 0.0
    %563 = vmatprep.subr.mxu0 0.0
    %564 = vmatpush1.msra.mxu0 0.0
    %565 = vmatprep.subr.mxu0 0.0
    %566 = vmatpush1.msra.mxu0 0.0
    %567 = vmatprep.mubr.f32.mxu0 0.0
    %568 = vmatmul.mubr.f32.gmra.mrb[0].mxu0 %v501
    %v569 = vpop.f32.mrb[0].mxu0
    %v570 = vadd.f32 0.0, %v569
    %v571 = vpop.f32.mrb[0].mxu0
    %572 = vdwg.mxu0
    %v573 = vxor.u32 %v570, 2147483648
    %v574 = vmul.f32 %v573, 1.442695
    %v575 = vpow.pop %v574
    %v576 = vadd.f32 %v575, 1.0
    %v577 = vrcp.pop %v576
    %v578 = vmul.f32 1.0, %v577
    %v579 = vtanh.pop %v570
    %v580 = vadd.f32 %v570, 1.0
    %v581 = vmul.f32 %v580, 0.5
    %v582 = vmax.f32 %v581, 0.0
    %v583 = vmin.f32 %v582, 1.0
    %585 = vrot.lane.b32.xlu0 %v579, 96
    %v586 = vpop.permute.xlu0 %585
    %v588 = vmul.f32 %v578, %v586
    %v589 = vmul.f32 %v337, %v588
    %v590 = vsub.f32 1.0, %v447
    %592 = vrot.lane.b32.xlu0 %v590, 64
    %v593 = vpop.permute.xlu0 %592
    %v595 = vmul.f32 %v476, %v593
    %597 = vset.pattern.permute.xlu0 64
    %598 = vperm.xlu0 %597, %v595
    %v599 = vpop.permute.xlu0 %598
    %v601 = vmul.f32 %v599, %v323
    %v602 = vadd.f32 %v589, %v601
    %603 = vrot.lane.b32.xlu0 %v447, 64
    %v604 = vpop.permute.xlu0 %603
    %v606 = vmul.f32 %v476, %v604
    %608 = vrot.lane.b32.xlu0 %v323, 112
    %v609 = vpop.permute.xlu0 %608
    %v611 = vmul.f32 %v578, %v609
    %613 = vrot.lane.b32.xlu0 %v588, 112
    %v614 = vpop.permute.xlu0 %613
    %v616 = vadd.f32 %v611, %v614
    %618 = vset.pattern.permute.xlu0 64
    %619 = vperm.xlu0 %618, %v606
    %v620 = vpop.permute.xlu0 %619
    %v622 = vmul.f32 %v620, %v616
    %624 = vrot.lane.b32.xlu0 %v622, 16
    %v625 = vpop.permute.xlu0 %624
    %v627 = vadd.f32 %v602, %v625
    %v628 = vtanh.pop %v627
    %630 = vrot.lane.b32.xlu0 %v628, 16
    %v631 = vpop.permute.xlu0 %630
    %v633 = vmul.f32 %v578, %v631
    %v634 = vmul.f32 %v337, %v633
    %v635 = vmul.f32 %v599, %v333
    %v636 = vadd.f32 %v634, %v635
    %v637 = vmul.f32 %v620, %v633
    %v638 = vadd.f32 %v636, %v637
    %640 = vset.pattern.permute.xlu0 64
    %641 = vperm.xlu0 %640, %v583
    %v642 = vpop.permute.xlu0 %641
    %v644 = vmul.f32 %v638, %v642
    %646 = vrot.lane.b32.xlu0 %v644, 96
    %v647 = vpop.permute.xlu0 %646
    %s649 = scalar_lea.vmem [#allocation8], 4
    %650 = vst.msk [vmem:[%s649] sm:$0xf] %vm344, %v647
    %s651 = scalar_lea.vmem [#allocation2], 8
    %v652 = vld [vmem:[%s651] sm:$0xf]
    %653 = vset.pattern.permute.xlu0 0
    %654 = vperm.xlu0 %653, %v590
    %v655 = vpop.permute.xlu0 %654
    %v657 = vmul.f32 %v655, %v475
    %v658 = vmul.f32 %v486, %v638
    %660 = vrot.lane.b32.xlu0 %v657, 64
    %v661 = vpop.permute.xlu0 %660
    %664 = vrot.lane.b32.xlu0 %v652, 48
    %v665 = vpop.permute.xlu0 %664
    %v667 = vsel %vm358, %v661, %v658
    %v668 = vsel %vm84, %v667, %v665
    %v669 = vsel %vm86, %v668, 1.0
    %v670 = vsel %vm88, %v669, 0.0
    %v672 = vsel %vm90, %v670, 0
    %674 = vmatprep.subr.mxu0 %v57
    %675 = vmatpush1.msra.mxu0 %v56
    %676 = vmatprep.subr.mxu0 %v59
    %677 = vmatpush1.msra.mxu0 %v58
    %678 = vmatprep.subr.mxu0 %v61
    %679 = vmatpush1.msra.mxu0 %v60
    %680 = vmatprep.subr.mxu0 %v63
    %681 = vmatpush1.msra.mxu0 %v62
    %682 = vmatprep.subr.mxu0 %v65
    %683 = vmatpush1.msra.mxu0 %v64
    %684 = vmatprep.subr.mxu0 %v67
    %685 = vmatpush1.msra.mxu0 %v66
    %686 = vmatprep.subr.mxu0 %v69
    %687 = vmatpush1.msra.mxu0 %v68
    %688 = vmatprep.subr.mxu0 %v71
    %689 = vmatpush1.msra.mxu0 %v70
    %690 = vmatprep.subr.mxu0 0.0
    %691 = vmatpush1.msra.mxu0 0.0
    %692 = vmatprep.subr.mxu0 0.0
    %693 = vmatpush1.msra.mxu0 0.0
    %694 = vmatprep.subr.mxu0 0.0
    %695 = vmatpush1.msra.mxu0 0.0
    %696 = vmatprep.subr.mxu0 0.0
    %697 = vmatpush1.msra.mxu0 0.0
    %698 = vmatprep.subr.mxu0 0.0
    %699 = vmatpush1.msra.mxu0 0.0
    %700 = vmatprep.subr.mxu0 0.0
    %701 = vmatpush1.msra.mxu0 0.0
    %702 = vmatprep.subr.mxu0 0.0
    %703 = vmatpush1.msra.mxu0 0.0
    %704 = vmatprep.subr.mxu0 0.0
    %705 = vmatpush1.msra.mxu0 0.0
    %706 = vmatprep.subr.mxu0 0.0
    %707 = vmatpush1.msra.mxu0 0.0
    %708 = vmatprep.subr.mxu0 0.0
    %709 = vmatpush1.msra.mxu0 0.0
    %710 = vmatprep.subr.mxu0 0.0
    %711 = vmatpush1.msra.mxu0 0.0
    %712 = vmatprep.subr.mxu0 0.0
    %713 = vmatpush1.msra.mxu0 0.0
    %714 = vmatprep.subr.mxu0 0.0
    %715 = vmatpush1.msra.mxu0 0.0
    %716 = vmatprep.subr.mxu0 0.0
    %717 = vmatpush1.msra.mxu0 0.0
    %718 = vmatprep.subr.mxu0 0.0
    %719 = vmatpush1.msra.mxu0 0.0
    %720 = vmatprep.subr.mxu0 0.0
    %721 = vmatpush1.msra.mxu0 0.0
    %722 = vmatprep.subr.mxu0 0.0
    %723 = vmatpush1.msra.mxu0 0.0
    %724 = vmatprep.subr.mxu0 0.0
    %725 = vmatpush1.msra.mxu0 0.0
    %726 = vmatprep.subr.mxu0 0.0
    %727 = vmatpush1.msra.mxu0 0.0
    %728 = vmatprep.subr.mxu0 0.0
    %729 = vmatpush1.msra.mxu0 0.0
    %730 = vmatprep.subr.mxu0 0.0
    %731 = vmatpush1.msra.mxu0 0.0
    %732 = vmatprep.subr.mxu0 0.0
    %733 = vmatpush1.msra.mxu0 0.0
    %734 = vmatprep.subr.mxu0 0.0
    %735 = vmatpush1.msra.mxu0 0.0
    %736 = vmatprep.subr.mxu0 0.0
    %737 = vmatpush1.msra.mxu0 0.0
    %738 = vmatprep.mubr.f32.mxu0 0.0
    %739 = vmatmul.mubr.f32.gmra.mrb[0].mxu0 %v672
    %v740 = vpop.f32.mrb[0].mxu0
    %v741 = vadd.f32 0.0, %v740
    %v742 = vpop.f32.mrb[0].mxu0
    %v743 = vadd.f32 0.0, %v742
    %744 = vdwg.mxu0
    %v745 = vxor.u32 %v741, 2147483648
    %v746 = vmul.f32 %v745, 1.442695
    %v747 = vpow.pop %v746
    %v748 = vadd.f32 %v747, 1.0
    %v749 = vrcp.pop %v748
    %v750 = vmul.f32 1.0, %v749
    %v751 = vtanh.pop %v741
    %v752 = vadd.f32 %v743, 1.0
    %v753 = vmul.f32 %v752, 0.5
    %v754 = vmax.f32 %v753, 0.0
    %v755 = vmin.f32 %v754, 1.0
    %757 = vrot.lane.b32.xlu0 %v751, 64
    %v758 = vpop.permute.xlu0 %757
    %v760 = vmul.f32 %v750, %v758
    %v761 = vmul.f32 %v486, %v760
    %763 = vrot.lane.b32.xlu0 %v469, 96
    %v764 = vpop.permute.xlu0 %763
    %v766 = vmul.f32 %v750, %v764
    %768 = vrot.lane.b32.xlu0 %v760, 96
    %v769 = vpop.permute.xlu0 %768
    %v771 = vadd.f32 %v766, %v769
    %v772 = vmul.f32 %v655, %v771
    %774 = vrot.lane.b32.xlu0 %v772, 32
    %v775 = vpop.permute.xlu0 %774
    %v777 = vadd.f32 %v761, %v775
    %v778 = vtanh.pop %v777
    %780 = vrot.lane.b32.xlu0 %v778, 32
    %v781 = vpop.permute.xlu0 %780
    %v783 = vmul.f32 %v750, %v781
    %v784 = vsub.f32 1.0, %v583
    %786 = vset.pattern.permute.xlu0 64
    %787 = vperm.xlu0 %786, %v784
    %v788 = vpop.permute.xlu0 %787
    %v790 = vmul.f32 %v788, %v638
    %792 = vset.pattern.permute.xlu0 0
    %793 = vperm.xlu0 %792, %v755
    %v794 = vpop.permute.xlu0 %793
    %v796 = vmul.f32 %v794, %v783
    %798 = vrot.lane.b32.xlu0 %v790, 96
    %v799 = vpop.permute.xlu0 %798
    %802 = vrot.lane.b32.xlu0 %v796, 80
    %v803 = vpop.permute.xlu0 %802
    %v805 = vsel %vm209, %v799, %v803
    %v806 = vsel %vm84, %v805, 1.0
    %v807 = vsel %vm212, %v806, 0.0
    %v809 = vsel %vm86, %v807, 0
    %811 = vmatprep.subr.mxu0 0.0
    %812 = vmatpush1.msra.mxu0 %v72
    %813 = vmatprep.subr.mxu0 0.0
    %814 = vmatpush1.msra.mxu0 %v73
    %815 = vmatprep.subr.mxu0 0.0
    %816 = vmatpush1.msra.mxu0 %v74
    %817 = vmatprep.subr.mxu0 0.0
    %818 = vmatpush1.msra.mxu0 %v75
    %819 = vmatprep.subr.mxu0 0.0
    %820 = vmatpush1.msra.mxu0 %v76
    %821 = vmatprep.subr.mxu0 0.0
    %822 = vmatpush1.msra.mxu0 %v77
    %823 = vmatprep.subr.mxu0 0.0
    %824 = vmatpush1.msra.mxu0 %v78
    %825 = vmatprep.subr.mxu0 0.0
    %826 = vmatpush1.msra.mxu0 0.0
    %827 = vmatprep.subr.mxu0 0.0
    %828 = vmatpush1.msra.mxu0 0.0
    %829 = vmatprep.subr.mxu0 0.0
    %830 = vmatpush1.msra.mxu0 0.0
    %831 = vmatprep.subr.mxu0 0.0
    %832 = vmatpush1.msra.mxu0 0.0
    %833 = vmatprep.subr.mxu0 0.0
    %834 = vmatpush1.msra.mxu0 0.0
    %835 = vmatprep.subr.mxu0 0.0
    %836 = vmatpush1.msra.mxu0 0.0
    %837 = vmatprep.subr.mxu0 0.0
    %838 = vmatpush1.msra.mxu0 0.0
    %839 = vmatprep.subr.mxu0 0.0
    %840 = vmatpush1.msra.mxu0 0.0
    %841 = vmatprep.subr.mxu0 0.0
    %842 = vmatpush1.msra.mxu0 0.0
    %843 = vmatprep.subr.mxu0 0.0
    %844 = vmatpush1.msra.mxu0 0.0
    %845 = vmatprep.subr.mxu0 0.0
    %846 = vmatpush1.msra.mxu0 0.0
    %847 = vmatprep.subr.mxu0 0.0
    %848 = vmatpush1.msra.mxu0 0.0
    %849 = vmatprep.subr.mxu0 0.0
    %850 = vmatpush1.msra.mxu0 0.0
    %851 = vmatprep.subr.mxu0 0.0
    %852 = vmatpush1.msra.mxu0 0.0
    %853 = vmatprep.subr.mxu0 0.0
    %854 = vmatpush1.msra.mxu0 0.0
    %855 = vmatprep.subr.mxu0 0.0
    %856 = vmatpush1.msra.mxu0 0.0
    %857 = vmatprep.subr.mxu0 0.0
    %858 = vmatpush1.msra.mxu0 0.0
    %859 = vmatprep.subr.mxu0 0.0
    %860 = vmatpush1.msra.mxu0 0.0
    %861 = vmatprep.subr.mxu0 0.0
    %862 = vmatpush1.msra.mxu0 0.0
    %863 = vmatprep.subr.mxu0 0.0
    %864 = vmatpush1.msra.mxu0 0.0
    %865 = vmatprep.subr.mxu0 0.0
    %866 = vmatpush1.msra.mxu0 0.0
    %867 = vmatprep.subr.mxu0 0.0
    %868 = vmatpush1.msra.mxu0 0.0
    %869 = vmatprep.subr.mxu0 0.0
    %870 = vmatpush1.msra.mxu0 0.0
    %871 = vmatprep.subr.mxu0 0.0
    %872 = vmatpush1.msra.mxu0 0.0
    %873 = vmatprep.subr.mxu0 0.0
    %874 = vmatpush1.msra.mxu0 0.0
    %875 = vmatprep.mubr.f32.mxu0 0.0
    %876 = vmatmul.mubr.f32.gmra.mrb[0].mxu0 %v809
    %v877 = vpop.f32.mrb[0].mxu0
    %v878 = vadd.f32 0.0, %v877
    %v879 = vpop.f32.mrb[0].mxu0
    %880 = vdwg.mxu0
    %v881 = vxor.u32 %v878, 2147483648
    %v882 = vmul.f32 %v881, 1.442695
    %v883 = vpow.pop %v882
    %v884 = vadd.f32 %v883, 1.0
    %v885 = vrcp.pop %v884
    %v886 = vmul.f32 1.0, %v885
    %v887 = vtanh.pop %v878
    %v888 = vadd.f32 %v878, 1.0
    %v889 = vmul.f32 %v888, 0.5
    %v890 = vmax.f32 %v889, 0.0
    %v891 = vmin.f32 %v890, 1.0
    %893 = vrot.lane.b32.xlu0 %v887, 96
    %v894 = vpop.permute.xlu0 %893
    %v896 = vmul.f32 %v886, %v894
    %v897 = vmul.f32 %v642, %v896
    %v898 = vsub.f32 1.0, %v755
    %900 = vrot.lane.b32.xlu0 %v898, 64
    %v901 = vpop.permute.xlu0 %900
    %v903 = vmul.f32 %v784, %v901
    %905 = vset.pattern.permute.xlu0 64
    %906 = vperm.xlu0 %905, %v903
    %v907 = vpop.permute.xlu0 %906
    %v909 = vmul.f32 %v907, %v627
    %v910 = vadd.f32 %v897, %v909
    %911 = vrot.lane.b32.xlu0 %v755, 64
    %v912 = vpop.permute.xlu0 %911
    %v914 = vmul.f32 %v784, %v912
    %916 = vrot.lane.b32.xlu0 %v627, 112
    %v917 = vpop.permute.xlu0 %916
    %v919 = vmul.f32 %v886, %v917
    %921 = vrot.lane.b32.xlu0 %v896, 112
    %v922 = vpop.permute.xlu0 %921
    %v924 = vadd.f32 %v919, %v922
    %926 = vset.pattern.permute.xlu0 64
    %927 = vperm.xlu0 %926, %v914
    %v928 = vpop.permute.xlu0 %927
    %v930 = vmul.f32 %v928, %v924
    %932 = vrot.lane.b32.xlu0 %v930, 16
    %v933 = vpop.permute.xlu0 %932
    %v935 = vadd.f32 %v910, %v933
    %v936 = vtanh.pop %v935
    %938 = vrot.lane.b32.xlu0 %v936, 16
    %v939 = vpop.permute.xlu0 %938
    %v941 = vmul.f32 %v886, %v939
    %v942 = vmul.f32 %v642, %v941
    %v943 = vmul.f32 %v907, %v638
    %v944 = vadd.f32 %v942, %v943
    %v945 = vmul.f32 %v928, %v941
    %v946 = vadd.f32 %v944, %v945
    %948 = vset.pattern.permute.xlu0 64
    %949 = vperm.xlu0 %948, %v891
    %v950 = vpop.permute.xlu0 %949
    %v952 = vmul.f32 %v946, %v950
    %954 = vrot.lane.b32.xlu0 %v952, 96
    %v955 = vpop.permute.xlu0 %954
    %s957 = scalar_lea.vmem [#allocation8], 8
    %958 = vst.msk [vmem:[%s957] sm:$0xf] %vm344, %v955
    %s959 = scalar_lea.vmem [#allocation2], 12
    %v960 = vld [vmem:[%s959] sm:$0xf]
    %961 = vset.pattern.permute.xlu0 0
    %962 = vperm.xlu0 %961, %v898
    %v963 = vpop.permute.xlu0 %962
    %v965 = vmul.f32 %v963, %v783
    %v966 = vmul.f32 %v794, %v946
    %968 = vrot.lane.b32.xlu0 %v965, 64
    %v969 = vpop.permute.xlu0 %968
    %972 = vrot.lane.b32.xlu0 %v960, 48
    %v973 = vpop.permute.xlu0 %972
    %v975 = vsel %vm358, %v969, %v966
    %v976 = vsel %vm84, %v975, %v973
    %v977 = vsel %vm86, %v976, 1.0
    %v978 = vsel %vm88, %v977, 0.0
    %v980 = vsel %vm90, %v978, 0
    %982 = vmatprep.subr.mxu0 %v57
    %983 = vmatpush1.msra.mxu0 %v56
    %984 = vmatprep.subr.mxu0 %v59
    %985 = vmatpush1.msra.mxu0 %v58
    %986 = vmatprep.subr.mxu0 %v61
    %987 = vmatpush1.msra.mxu0 %v60
    %988 = vmatprep.subr.mxu0 %v63
    %989 = vmatpush1.msra.mxu0 %v62
    %990 = vmatprep.subr.mxu0 %v65
    %991 = vmatpush1.msra.mxu0 %v64
    %992 = vmatprep.subr.mxu0 %v67
    %993 = vmatpush1.msra.mxu0 %v66
    %994 = vmatprep.subr.mxu0 %v69
    %995 = vmatpush1.msra.mxu0 %v68
    %996 = vmatprep.subr.mxu0 %v71
    %997 = vmatpush1.msra.mxu0 %v70
    %998 = vmatprep.subr.mxu0 0.0
    %999 = vmatpush1.msra.mxu0 0.0
    %1000 = vmatprep.subr.mxu0 0.0
    %1001 = vmatpush1.msra.mxu0 0.0
    %1002 = vmatprep.subr.mxu0 0.0
    %1003 = vmatpush1.msra.mxu0 0.0
    %1004 = vmatprep.subr.mxu0 0.0
    %1005 = vmatpush1.msra.mxu0 0.0
    %1006 = vmatprep.subr.mxu0 0.0
    %1007 = vmatpush1.msra.mxu0 0.0
    %1008 = vmatprep.subr.mxu0 0.0
    %1009 = vmatpush1.msra.mxu0 0.0
    %1010 = vmatprep.subr.mxu0 0.0
    %1011 = vmatpush1.msra.mxu0 0.0
    %1012 = vmatprep.subr.mxu0 0.0
    %1013 = vmatpush1.msra.mxu0 0.0
    %1014 = vmatprep.subr.mxu0 0.0
    %1015 = vmatpush1.msra.mxu0 0.0
    %1016 = vmatprep.subr.mxu0 0.0
    %1017 = vmatpush1.msra.mxu0 0.0
    %1018 = vmatprep.subr.mxu0 0.0
    %1019 = vmatpush1.msra.mxu0 0.0
    %1020 = vmatprep.subr.mxu0 0.0
    %1021 = vmatpush1.msra.mxu0 0.0
    %1022 = vmatprep.subr.mxu0 0.0
    %1023 = vmatpush1.msra.mxu0 0.0
    %1024 = vmatprep.subr.mxu0 0.0
    %1025 = vmatpush1.msra.mxu0 0.0
    %1026 = vmatprep.subr.mxu0 0.0
    %1027 = vmatpush1.msra.mxu0 0.0
    %1028 = vmatprep.subr.mxu0 0.0
    %1029 = vmatpush1.msra.mxu0 0.0
    %1030 = vmatprep.subr.mxu0 0.0
    %1031 = vmatpush1.msra.mxu0 0.0
    %1032 = vmatprep.subr.mxu0 0.0
    %1033 = vmatpush1.msra.mxu0 0.0
    %1034 = vmatprep.subr.mxu0 0.0
    %1035 = vmatpush1.msra.mxu0 0.0
    %1036 = vmatprep.subr.mxu0 0.0
    %1037 = vmatpush1.msra.mxu0 0.0
    %1038 = vmatprep.subr.mxu0 0.0
    %1039 = vmatpush1.msra.mxu0 0.0
    %1040 = vmatprep.subr.mxu0 0.0
    %1041 = vmatpush1.msra.mxu0 0.0
    %1042 = vmatprep.subr.mxu0 0.0
    %1043 = vmatpush1.msra.mxu0 0.0
    %1044 = vmatprep.subr.mxu0 0.0
    %1045 = vmatpush1.msra.mxu0 0.0
    %1046 = vmatprep.mubr.f32.mxu0 0.0
    %1047 = vmatmul.mubr.f32.gmra.mrb[0].mxu0 %v980
    %v1048 = vpop.f32.mrb[0].mxu0
    %v1049 = vadd.f32 0.0, %v1048
    %v1050 = vpop.f32.mrb[0].mxu0
    %v1051 = vadd.f32 0.0, %v1050
    %1052 = vdwg.mxu0
    %v1053 = vxor.u32 %v1049, 2147483648
    %v1054 = vmul.f32 %v1053, 1.442695
    %v1055 = vpow.pop %v1054
    %v1056 = vadd.f32 %v1055, 1.0
    %v1057 = vrcp.pop %v1056
    %v1058 = vmul.f32 1.0, %v1057
    %v1059 = vtanh.pop %v1049
    %v1060 = vadd.f32 %v1051, 1.0
    %v1061 = vmul.f32 %v1060, 0.5
    %v1062 = vmax.f32 %v1061, 0.0
    %v1063 = vmin.f32 %v1062, 1.0
    %1065 = vrot.lane.b32.xlu0 %v1059, 64
    %v1066 = vpop.permute.xlu0 %1065
    %v1068 = vmul.f32 %v1058, %v1066
    %v1069 = vmul.f32 %v794, %v1068
    %1071 = vrot.lane.b32.xlu0 %v777, 96
    %v1072 = vpop.permute.xlu0 %1071
    %v1074 = vmul.f32 %v1058, %v1072
    %1076 = vrot.lane.b32.xlu0 %v1068, 96
    %v1077 = vpop.permute.xlu0 %1076
    %v1079 = vadd.f32 %v1074, %v1077
    %v1080 = vmul.f32 %v963, %v1079
    %1082 = vrot.lane.b32.xlu0 %v1080, 32
    %v1083 = vpop.permute.xlu0 %1082
    %v1085 = vadd.f32 %v1069, %v1083
    %v1086 = vtanh.pop %v1085
    %1088 = vrot.lane.b32.xlu0 %v1086, 32
    %v1089 = vpop.permute.xlu0 %1088
    %v1091 = vmul.f32 %v1058, %v1089
    %v1092 = vsub.f32 1.0, %v891
    %1094 = vset.pattern.permute.xlu0 64
    %1095 = vperm.xlu0 %1094, %v1092
    %v1096 = vpop.permute.xlu0 %1095
    %v1098 = vmul.f32 %v1096, %v946
    %1100 = vset.pattern.permute.xlu0 0
    %1101 = vperm.xlu0 %1100, %v1063
    %v1102 = vpop.permute.xlu0 %1101
    %v1104 = vmul.f32 %v1102, %v1091
    %1106 = vrot.lane.b32.xlu0 %v1098, 96
    %v1107 = vpop.permute.xlu0 %1106
    %1110 = vrot.lane.b32.xlu0 %v1104, 80
    %v1111 = vpop.permute.xlu0 %1110
    %v1113 = vsel %vm209, %v1107, %v1111
    %v1114 = vsel %vm84, %v1113, 1.0
    %v1115 = vsel %vm212, %v1114, 0.0
    %v1117 = vsel %vm86, %v1115, 0
    %1119 = vmatprep.subr.mxu0 0.0
    %1120 = vmatpush1.msra.mxu0 %v72
    %1121 = vmatprep.subr.mxu0 0.0
    %1122 = vmatpush1.msra.mxu0 %v73
    %1123 = vmatprep.subr.mxu0 0.0
    %1124 = vmatpush1.msra.mxu0 %v74
    %1125 = vmatprep.subr.mxu0 0.0
    %1126 = vmatpush1.msra.mxu0 %v75
    %1127 = vmatprep.subr.mxu0 0.0
    %1128 = vmatpush1.msra.mxu0 %v76
    %1129 = vmatprep.subr.mxu0 0.0
    %1130 = vmatpush1.msra.mxu0 %v77
    %1131 = vmatprep.subr.mxu0 0.0
    %1132 = vmatpush1.msra.mxu0 %v78
    %1133 = vmatprep.subr.mxu0 0.0
    %1134 = vmatpush1.msra.mxu0 0.0
    %1135 = vmatprep.subr.mxu0 0.0
    %1136 = vmatpush1.msra.mxu0 0.0
    %1137 = vmatprep.subr.mxu0 0.0
    %1138 = vmatpush1.msra.mxu0 0.0
    %1139 = vmatprep.subr.mxu0 0.0
    %1140 = vmatpush1.msra.mxu0 0.0
    %1141 = vmatprep.subr.mxu0 0.0
    %1142 = vmatpush1.msra.mxu0 0.0
    %1143 = vmatprep.subr.mxu0 0.0
    %1144 = vmatpush1.msra.mxu0 0.0
    %1145 = vmatprep.subr.mxu0 0.0
    %1146 = vmatpush1.msra.mxu0 0.0
    %1147 = vmatprep.subr.mxu0 0.0
    %1148 = vmatpush1.msra.mxu0 0.0
    %1149 = vmatprep.subr.mxu0 0.0
    %1150 = vmatpush1.msra.mxu0 0.0
    %1151 = vmatprep.subr.mxu0 0.0
    %1152 = vmatpush1.msra.mxu0 0.0
    %1153 = vmatprep.subr.mxu0 0.0
    %1154 = vmatpush1.msra.mxu0 0.0
    %1155 = vmatprep.subr.mxu0 0.0
    %1156 = vmatpush1.msra.mxu0 0.0
    %1157 = vmatprep.subr.mxu0 0.0
    %1158 = vmatpush1.msra.mxu0 0.0
    %1159 = vmatprep.subr.mxu0 0.0
    %1160 = vmatpush1.msra.mxu0 0.0
    %1161 = vmatprep.subr.mxu0 0.0
    %1162 = vmatpush1.msra.mxu0 0.0
    %1163 = vmatprep.subr.mxu0 0.0
    %1164 = vmatpush1.msra.mxu0 0.0
    %1165 = vmatprep.subr.mxu0 0.0
    %1166 = vmatpush1.msra.mxu0 0.0
    %1167 = vmatprep.subr.mxu0 0.0
    %1168 = vmatpush1.msra.mxu0 0.0
    %1169 = vmatprep.subr.mxu0 0.0
    %1170 = vmatpush1.msra.mxu0 0.0
    %1171 = vmatprep.subr.mxu0 0.0
    %1172 = vmatpush1.msra.mxu0 0.0
    %1173 = vmatprep.subr.mxu0 0.0
    %1174 = vmatpush1.msra.mxu0 0.0
    %1175 = vmatprep.subr.mxu0 0.0
    %1176 = vmatpush1.msra.mxu0 0.0
    %1177 = vmatprep.subr.mxu0 0.0
    %1178 = vmatpush1.msra.mxu0 0.0
    %1179 = vmatprep.subr.mxu0 0.0
    %1180 = vmatpush1.msra.mxu0 0.0
    %1181 = vmatprep.subr.mxu0 0.0
    %1182 = vmatpush1.msra.mxu0 0.0
    %1183 = vmatprep.mubr.f32.mxu0 0.0
    %1184 = vmatmul.mubr.f32.gmra.mrb[0].mxu0 %v1117
    %v1185 = vpop.f32.mrb[0].mxu0
    %v1186 = vadd.f32 0.0, %v1185
    %v1187 = vpop.f32.mrb[0].mxu0
    %1188 = vdwg.mxu0
    %v1189 = vxor.u32 %v1186, 2147483648
    %v1190 = vmul.f32 %v1189, 1.442695
    %v1191 = vpow.pop %v1190
    %v1192 = vadd.f32 %v1191, 1.0
    %v1193 = vrcp.pop %v1192
    %v1194 = vmul.f32 1.0, %v1193
    %v1195 = vtanh.pop %v1186
    %v1196 = vadd.f32 %v1186, 1.0
    %v1197 = vmul.f32 %v1196, 0.5
    %v1198 = vmax.f32 %v1197, 0.0
    %v1199 = vmin.f32 %v1198, 1.0
    %1201 = vrot.lane.b32.xlu0 %v1195, 96
    %v1202 = vpop.permute.xlu0 %1201
    %v1204 = vmul.f32 %v1194, %v1202
    %v1205 = vmul.f32 %v950, %v1204
    %v1206 = vsub.f32 1.0, %v1063
    %1208 = vrot.lane.b32.xlu0 %v1206, 64
    %v1209 = vpop.permute.xlu0 %1208
    %v1211 = vmul.f32 %v1092, %v1209
    %1213 = vset.pattern.permute.xlu0 64
    %1214 = vperm.xlu0 %1213, %v1211
    %v1215 = vpop.permute.xlu0 %1214
    %v1217 = vmul.f32 %v1215, %v935
    %v1218 = vadd.f32 %v1205, %v1217
    %1219 = vrot.lane.b32.xlu0 %v1063, 64
    %v1220 = vpop.permute.xlu0 %1219
    %v1222 = vmul.f32 %v1092, %v1220
    %1224 = vrot.lane.b32.xlu0 %v935, 112
    %v1225 = vpop.permute.xlu0 %1224
    %v1227 = vmul.f32 %v1194, %v1225
    %1229 = vrot.lane.b32.xlu0 %v1204, 112
    %v1230 = vpop.permute.xlu0 %1229
    %v1232 = vadd.f32 %v1227, %v1230
    %1234 = vset.pattern.permute.xlu0 64
    %1235 = vperm.xlu0 %1234, %v1222
    %v1236 = vpop.permute.xlu0 %1235
    %v1238 = vmul.f32 %v1236, %v1232
    %1240 = vrot.lane.b32.xlu0 %v1238, 16
    %v1241 = vpop.permute.xlu0 %1240
    %v1243 = vadd.f32 %v1218, %v1241
    %v1244 = vtanh.pop %v1243
    %1246 = vrot.lane.b32.xlu0 %v1244, 16
    %v1247 = vpop.permute.xlu0 %1246
    %v1249 = vmul.f32 %v1194, %v1247
    %v1250 = vmul.f32 %v950, %v1249
    %v1251 = vmul.f32 %v1215, %v946
    %v1252 = vadd.f32 %v1250, %v1251
    %v1253 = vmul.f32 %v1236, %v1249
    %v1254 = vadd.f32 %v1252, %v1253
    %1256 = vset.pattern.permute.xlu0 64
    %1257 = vperm.xlu0 %1256, %v1199
    %v1258 = vpop.permute.xlu0 %1257
    %v1260 = vmul.f32 %v1254, %v1258
    %1262 = vrot.lane.b32.xlu0 %v1260, 96
    %v1263 = vpop.permute.xlu0 %1262
    %s1265 = scalar_lea.vmem [#allocation8], 12
    %1266 = vst.msk [vmem:[%s1265] sm:$0xf] %vm344, %v1263
    %s1267 = scalar_lea.vmem [#allocation2], 16
    %v1268 = vld [vmem:[%s1267] sm:$0xf]
    %1269 = vset.pattern.permute.xlu0 0
    %1270 = vperm.xlu0 %1269, %v1206
    %v1271 = vpop.permute.xlu0 %1270
    %v1273 = vmul.f32 %v1271, %v1091
    %v1274 = vmul.f32 %v1102, %v1254
    %1276 = vrot.lane.b32.xlu0 %v1273, 64
    %v1277 = vpop.permute.xlu0 %1276
    %1280 = vrot.lane.b32.xlu0 %v1268, 48
    %v1281 = vpop.permute.xlu0 %1280
    %v1283 = vsel %vm358, %v1277, %v1274
    %v1284 = vsel %vm84, %v1283, %v1281
    %v1285 = vsel %vm86, %v1284, 1.0
    %v1286 = vsel %vm88, %v1285, 0.0
    %v1288 = vsel %vm90, %v1286, 0
    %1290 = vmatprep.subr.mxu0 %v57
    %1291 = vmatpush1.msra.mxu0 %v56
    %1292 = vmatprep.subr.mxu0 %v59
    %1293 = vmatpush1.msra.mxu0 %v58
    %1294 = vmatprep.subr.mxu0 %v61
    %1295 = vmatpush1.msra.mxu0 %v60
    %1296 = vmatprep.subr.mxu0 %v63
    %1297 = vmatpush1.msra.mxu0 %v62
    %1298 = vmatprep.subr.mxu0 %v65
    %1299 = vmatpush1.msra.mxu0 %v64
    %1300 = vmatprep.subr.mxu0 %v67
    %1301 = vmatpush1.msra.mxu0 %v66
    %1302 = vmatprep.subr.mxu0 %v69
    %1303 = vmatpush1.msra.mxu0 %v68
    %1304 = vmatprep.subr.mxu0 %v71
    %1305 = vmatpush1.msra.mxu0 %v70
    %1306 = vmatprep.subr.mxu0 0.0
    %1307 = vmatpush1.msra.mxu0 0.0
    %1308 = vmatprep.subr.mxu0 0.0
    %1309 = vmatpush1.msra.mxu0 0.0
    %1310 = vmatprep.subr.mxu0 0.0
    %1311 = vmatpush1.msra.mxu0 0.0
    %1312 = vmatprep.subr.mxu0 0.0
    %1313 = vmatpush1.msra.mxu0 0.0
    %1314 = vmatprep.subr.mxu0 0.0
    %1315 = vmatpush1.msra.mxu0 0.0
    %1316 = vmatprep.subr.mxu0 0.0
    %1317 = vmatpush1.msra.mxu0 0.0
    %1318 = vmatprep.subr.mxu0 0.0
    %1319 = vmatpush1.msra.mxu0 0.0
    %1320 = vmatprep.subr.mxu0 0.0
    %1321 = vmatpush1.msra.mxu0 0.0
    %1322 = vmatprep.subr.mxu0 0.0
    %1323 = vmatpush1.msra.mxu0 0.0
    %1324 = vmatprep.subr.mxu0 0.0
    %1325 = vmatpush1.msra.mxu0 0.0
    %1326 = vmatprep.subr.mxu0 0.0
    %1327 = vmatpush1.msra.mxu0 0.0
    %1328 = vmatprep.subr.mxu0 0.0
    %1329 = vmatpush1.msra.mxu0 0.0
    %1330 = vmatprep.subr.mxu0 0.0
    %1331 = vmatpush1.msra.mxu0 0.0
    %1332 = vmatprep.subr.mxu0 0.0
    %1333 = vmatpush1.msra.mxu0 0.0
    %1334 = vmatprep.subr.mxu0 0.0
    %1335 = vmatpush1.msra.mxu0 0.0
    %1336 = vmatprep.subr.mxu0 0.0
    %1337 = vmatpush1.msra.mxu0 0.0
    %1338 = vmatprep.subr.mxu0 0.0
    %1339 = vmatpush1.msra.mxu0 0.0
    %1340 = vmatprep.subr.mxu0 0.0
    %1341 = vmatpush1.msra.mxu0 0.0
    %1342 = vmatprep.subr.mxu0 0.0
    %1343 = vmatpush1.msra.mxu0 0.0
    %1344 = vmatprep.subr.mxu0 0.0
    %1345 = vmatpush1.msra.mxu0 0.0
    %1346 = vmatprep.subr.mxu0 0.0
    %1347 = vmatpush1.msra.mxu0 0.0
    %1348 = vmatprep.subr.mxu0 0.0
    %1349 = vmatpush1.msra.mxu0 0.0
    %1350 = vmatprep.subr.mxu0 0.0
    %1351 = vmatpush1.msra.mxu0 0.0
    %1352 = vmatprep.subr.mxu0 0.0
    %1353 = vmatpush1.msra.mxu0 0.0
    %1354 = vmatprep.mubr.f32.mxu0 0.0
    %1355 = vmatmul.mubr.f32.gmra.mrb[0].mxu0 %v1288
    %v1356 = vpop.f32.mrb[0].mxu0
    %v1357 = vadd.f32 0.0, %v1356
    %v1358 = vpop.f32.mrb[0].mxu0
    %v1359 = vadd.f32 0.0, %v1358
    %1360 = vdwg.mxu0
    %v1361 = vxor.u32 %v1357, 2147483648
    %v1362 = vmul.f32 %v1361, 1.442695
    %v1363 = vpow.pop %v1362
    %v1364 = vadd.f32 %v1363, 1.0
    %v1365 = vrcp.pop %v1364
    %v1366 = vmul.f32 1.0, %v1365
    %v1367 = vtanh.pop %v1357
    %v1368 = vadd.f32 %v1359, 1.0
    %v1369 = vmul.f32 %v1368, 0.5
    %v1370 = vmax.f32 %v1369, 0.0
    %v1371 = vmin.f32 %v1370, 1.0
    %1373 = vrot.lane.b32.xlu0 %v1367, 64
    %v1374 = vpop.permute.xlu0 %1373
    %v1376 = vmul.f32 %v1366, %v1374
    %v1377 = vmul.f32 %v1102, %v1376
    %1379 = vrot.lane.b32.xlu0 %v1085, 96
    %v1380 = vpop.permute.xlu0 %1379
    %v1382 = vmul.f32 %v1366, %v1380
    %1384 = vrot.lane.b32.xlu0 %v1376, 96
    %v1385 = vpop.permute.xlu0 %1384
    %v1387 = vadd.f32 %v1382, %v1385
    %v1388 = vmul.f32 %v1271, %v1387
    %1390 = vrot.lane.b32.xlu0 %v1388, 32
    %v1391 = vpop.permute.xlu0 %1390
    %v1393 = vadd.f32 %v1377, %v1391
    %v1394 = vtanh.pop %v1393
    %1396 = vrot.lane.b32.xlu0 %v1394, 32
    %v1397 = vpop.permute.xlu0 %1396
    %v1399 = vmul.f32 %v1366, %v1397
    %v1400 = vsub.f32 1.0, %v1199
    %1402 = vset.pattern.permute.xlu0 64
    %1403 = vperm.xlu0 %1402, %v1400
    %v1404 = vpop.permute.xlu0 %1403
    %v1406 = vmul.f32 %v1404, %v1254
    %1408 = vset.pattern.permute.xlu0 0
    %1409 = vperm.xlu0 %1408, %v1371
    %v1410 = vpop.permute.xlu0 %1409
    %v1412 = vmul.f32 %v1410, %v1399
    %1414 = vrot.lane.b32.xlu0 %v1406, 96
    %v1415 = vpop.permute.xlu0 %1414
    %1418 = vrot.lane.b32.xlu0 %v1412, 80
    %v1419 = vpop.permute.xlu0 %1418
    %v1421 = vsel %vm209, %v1415, %v1419
    %v1422 = vsel %vm84, %v1421, 1.0
    %v1423 = vsel %vm212, %v1422, 0.0
    %v1425 = vsel %vm86, %v1423, 0
    %1427 = vmatprep.subr.mxu0 0.0
    %1428 = vmatpush1.msra.mxu0 %v72
    %1429 = vmatprep.subr.mxu0 0.0
    %1430 = vmatpush1.msra.mxu0 %v73
    %1431 = vmatprep.subr.mxu0 0.0
    %1432 = vmatpush1.msra.mxu0 %v74
    %1433 = vmatprep.subr.mxu0 0.0
    %1434 = vmatpush1.msra.mxu0 %v75
    %1435 = vmatprep.subr.mxu0 0.0
    %1436 = vmatpush1.msra.mxu0 %v76
    %1437 = vmatprep.subr.mxu0 0.0
    %1438 = vmatpush1.msra.mxu0 %v77
    %1439 = vmatprep.subr.mxu0 0.0
    %1440 = vmatpush1.msra.mxu0 %v78
    %1441 = vmatprep.subr.mxu0 0.0
    %1442 = vmatpush1.msra.mxu0 0.0
    %1443 = vmatprep.subr.mxu0 0.0
    %1444 = vmatpush1.msra.mxu0 0.0
    %1445 = vmatprep.subr.mxu0 0.0
    %1446 = vmatpush1.msra.mxu0 0.0
    %1447 = vmatprep.subr.mxu0 0.0
    %1448 = vmatpush1.msra.mxu0 0.0
    %1449 = vmatprep.subr.mxu0 0.0
    %1450 = vmatpush1.msra.mxu0 0.0
    %1451 = vmatprep.subr.mxu0 0.0
    %1452 = vmatpush1.msra.mxu0 0.0
    %1453 = vmatprep.subr.mxu0 0.0
    %1454 = vmatpush1.msra.mxu0 0.0
    %1455 = vmatprep.subr.mxu0 0.0
    %1456 = vmatpush1.msra.mxu0 0.0
    %1457 = vmatprep.subr.mxu0 0.0
    %1458 = vmatpush1.msra.mxu0 0.0
    %1459 = vmatprep.subr.mxu0 0.0
    %1460 = vmatpush1.msra.mxu0 0.0
    %1461 = vmatprep.subr.mxu0 0.0
    %1462 = vmatpush1.msra.mxu0 0.0
    %1463 = vmatprep.subr.mxu0 0.0
    %1464 = vmatpush1.msra.mxu0 0.0
    %1465 = vmatprep.subr.mxu0 0.0
    %1466 = vmatpush1.msra.mxu0 0.0
    %1467 = vmatprep.subr.mxu0 0.0
    %1468 = vmatpush1.msra.mxu0 0.0
    %1469 = vmatprep.subr.mxu0 0.0
    %1470 = vmatpush1.msra.mxu0 0.0
    %1471 = vmatprep.subr.mxu0 0.0
    %1472 = vmatpush1.msra.mxu0 0.0
    %1473 = vmatprep.subr.mxu0 0.0
    %1474 = vmatpush1.msra.mxu0 0.0
    %1475 = vmatprep.subr.mxu0 0.0
    %1476 = vmatpush1.msra.mxu0 0.0
    %1477 = vmatprep.subr.mxu0 0.0
    %1478 = vmatpush1.msra.mxu0 0.0
    %1479 = vmatprep.subr.mxu0 0.0
    %1480 = vmatpush1.msra.mxu0 0.0
    %1481 = vmatprep.subr.mxu0 0.0
    %1482 = vmatpush1.msra.mxu0 0.0
    %1483 = vmatprep.subr.mxu0 0.0
    %1484 = vmatpush1.msra.mxu0 0.0
    %1485 = vmatprep.subr.mxu0 0.0
    %1486 = vmatpush1.msra.mxu0 0.0
    %1487 = vmatprep.subr.mxu0 0.0
    %1488 = vmatpush1.msra.mxu0 0.0
    %1489 = vmatprep.subr.mxu0 0.0
    %1490 = vmatpush1.msra.mxu0 0.0
    %1491 = vmatprep.mubr.f32.mxu0 0.0
    %1492 = vmatmul.mubr.f32.gmra.mrb[0].mxu0 %v1425
    %v1493 = vpop.f32.mrb[0].mxu0
    %v1494 = vadd.f32 0.0, %v1493
    %v1495 = vpop.f32.mrb[0].mxu0
    %1496 = vdwg.mxu0
    %v1497 = vxor.u32 %v1494, 2147483648
    %v1498 = vmul.f32 %v1497, 1.442695
    %v1499 = vpow.pop %v1498
    %v1500 = vadd.f32 %v1499, 1.0
    %v1501 = vrcp.pop %v1500
    %v1502 = vmul.f32 1.0, %v1501
    %v1503 = vtanh.pop %v1494
    %v1504 = vadd.f32 %v1494, 1.0
    %v1505 = vmul.f32 %v1504, 0.5
    %v1506 = vmax.f32 %v1505, 0.0
    %v1507 = vmin.f32 %v1506, 1.0
    %1509 = vrot.lane.b32.xlu0 %v1503, 96
    %v1510 = vpop.permute.xlu0 %1509
    %v1512 = vmul.f32 %v1502, %v1510
    %v1513 = vmul.f32 %v1258, %v1512
    %v1514 = vsub.f32 1.0, %v1371
    %1516 = vrot.lane.b32.xlu0 %v1514, 64
    %v1517 = vpop.permute.xlu0 %1516
    %v1519 = vmul.f32 %v1400, %v1517
    %1521 = vset.pattern.permute.xlu0 64
    %1522 = vperm.xlu0 %1521, %v1519
    %v1523 = vpop.permute.xlu0 %1522
    %v1525 = vmul.f32 %v1523, %v1243
    %v1526 = vadd.f32 %v1513, %v1525
    %1527 = vrot.lane.b32.xlu0 %v1371, 64
    %v1528 = vpop.permute.xlu0 %1527
    %v1530 = vmul.f32 %v1400, %v1528
    %1532 = vrot.lane.b32.xlu0 %v1243, 112
    %v1533 = vpop.permute.xlu0 %1532
    %v1535 = vmul.f32 %v1502, %v1533
    %1537 = vrot.lane.b32.xlu0 %v1512, 112
    %v1538 = vpop.permute.xlu0 %1537
    %v1540 = vadd.f32 %v1535, %v1538
    %1542 = vset.pattern.permute.xlu0 64
    %1543 = vperm.xlu0 %1542, %v1530
    %v1544 = vpop.permute.xlu0 %1543
    %v1546 = vmul.f32 %v1544, %v1540
    %1548 = vrot.lane.b32.xlu0 %v1546, 16
    %v1549 = vpop.permute.xlu0 %1548
    %v1551 = vadd.f32 %v1526, %v1549
    %v1552 = vtanh.pop %v1551
    %1554 = vrot.lane.b32.xlu0 %v1552, 16
    %v1555 = vpop.permute.xlu0 %1554
    %v1557 = vmul.f32 %v1502, %v1555
    %v1558 = vmul.f32 %v1258, %v1557
    %v1559 = vmul.f32 %v1523, %v1254
    %v1560 = vadd.f32 %v1558, %v1559
    %v1561 = vmul.f32 %v1544, %v1557
    %v1562 = vadd.f32 %v1560, %v1561
    %1564 = vset.pattern.permute.xlu0 64
    %1565 = vperm.xlu0 %1564, %v1507
    %v1566 = vpop.permute.xlu0 %1565
    %v1568 = vmul.f32 %v1562, %v1566
    %1570 = vrot.lane.b32.xlu0 %v1568, 96
    %v1571 = vpop.permute.xlu0 %1570
    %s1573 = scalar_lea.vmem [#allocation8], 16
    %1574 = vst.msk [vmem:[%s1573] sm:$0xf] %vm344, %v1571
    %s1575 = scalar_lea.vmem [#allocation2], 20
    %v1576 = vld [vmem:[%s1575] sm:$0xf]
    %1577 = vset.pattern.permute.xlu0 0
    %1578 = vperm.xlu0 %1577, %v1514
    %v1579 = vpop.permute.xlu0 %1578
    %v1581 = vmul.f32 %v1579, %v1399
    %v1582 = vmul.f32 %v1410, %v1562
    %1584 = vrot.lane.b32.xlu0 %v1581, 64
    %v1585 = vpop.permute.xlu0 %1584
    %1588 = vrot.lane.b32.xlu0 %v1576, 48
    %v1589 = vpop.permute.xlu0 %1588
    %v1591 = vsel %vm358, %v1585, %v1582
    %v1592 = vsel %vm84, %v1591, %v1589
    %v1593 = vsel %vm86, %v1592, 1.0
    %v1594 = vsel %vm88, %v1593, 0.0
    %v1596 = vsel %vm90, %v1594, 0
    %1598 = vmatprep.subr.mxu0 %v57
    %1599 = vmatpush1.msra.mxu0 %v56
    %1600 = vmatprep.subr.mxu0 %v59
    %1601 = vmatpush1.msra.mxu0 %v58
    %1602 = vmatprep.subr.mxu0 %v61
    %1603 = vmatpush1.msra.mxu0 %v60
    %1604 = vmatprep.subr.mxu0 %v63
    %1605 = vmatpush1.msra.mxu0 %v62
    %1606 = vmatprep.subr.mxu0 %v65
    %1607 = vmatpush1.msra.mxu0 %v64
    %1608 = vmatprep.subr.mxu0 %v67
    %1609 = vmatpush1.msra.mxu0 %v66
    %1610 = vmatprep.subr.mxu0 %v69
    %1611 = vmatpush1.msra.mxu0 %v68
    %1612 = vmatprep.subr.mxu0 %v71
    %1613 = vmatpush1.msra.mxu0 %v70
    %1614 = vmatprep.subr.mxu0 0.0
    %1615 = vmatpush1.msra.mxu0 0.0
    %1616 = vmatprep.subr.mxu0 0.0
    %1617 = vmatpush1.msra.mxu0 0.0
    %1618 = vmatprep.subr.mxu0 0.0
    %1619 = vmatpush1.msra.mxu0 0.0
    %1620 = vmatprep.subr.mxu0 0.0
    %1621 = vmatpush1.msra.mxu0 0.0
    %1622 = vmatprep.subr.mxu0 0.0
    %1623 = vmatpush1.msra.mxu0 0.0
    %1624 = vmatprep.subr.mxu0 0.0
    %1625 = vmatpush1.msra.mxu0 0.0
    %1626 = vmatprep.subr.mxu0 0.0
    %1627 = vmatpush1.msra.mxu0 0.0
    %1628 = vmatprep.subr.mxu0 0.0
    %1629 = vmatpush1.msra.mxu0 0.0
    %1630 = vmatprep.subr.mxu0 0.0
    %1631 = vmatpush1.msra.mxu0 0.0
    %1632 = vmatprep.subr.mxu0 0.0
    %1633 = vmatpush1.msra.mxu0 0.0
    %1634 = vmatprep.subr.mxu0 0.0
    %1635 = vmatpush1.msra.mxu0 0.0
    %1636 = vmatprep.subr.mxu0 0.0
    %1637 = vmatpush1.msra.mxu0 0.0
    %1638 = vmatprep.subr.mxu0 0.0
    %1639 = vmatpush1.msra.mxu0 0.0
    %1640 = vmatprep.subr.mxu0 0.0
    %1641 = vmatpush1.msra.mxu0 0.0
    %1642 = vmatprep.subr.mxu0 0.0
    %1643 = vmatpush1.msra.mxu0 0.0
    %1644 = vmatprep.subr.mxu0 0.0
    %1645 = vmatpush1.msra.mxu0 0.0
    %1646 = vmatprep.subr.mxu0 0.0
    %1647 = vmatpush1.msra.mxu0 0.0
    %1648 = vmatprep.subr.mxu0 0.0
    %1649 = vmatpush1.msra.mxu0 0.0
    %1650 = vmatprep.subr.mxu0 0.0
    %1651 = vmatpush1.msra.mxu0 0.0
    %1652 = vmatprep.subr.mxu0 0.0
    %1653 = vmatpush1.msra.mxu0 0.0
    %1654 = vmatprep.subr.mxu0 0.0
    %1655 = vmatpush1.msra.mxu0 0.0
    %1656 = vmatprep.subr.mxu0 0.0
    %1657 = vmatpush1.msra.mxu0 0.0
    %1658 = vmatprep.subr.mxu0 0.0
    %1659 = vmatpush1.msra.mxu0 0.0
    %1660 = vmatprep.subr.mxu0 0.0
    %1661 = vmatpush1.msra.mxu0 0.0
    %1662 = vmatprep.mubr.f32.mxu0 0.0
    %1663 = vmatmul.mubr.f32.gmra.mrb[0].mxu0 %v1596
    %v1664 = vpop.f32.mrb[0].mxu0
    %v1665 = vadd.f32 0.0, %v1664
    %v1666 = vpop.f32.mrb[0].mxu0
    %v1667 = vadd.f32 0.0, %v1666
    %1668 = vdwg.mxu0
    %v1669 = vxor.u32 %v1665, 2147483648
    %v1670 = vmul.f32 %v1669, 1.442695
    %v1671 = vpow.pop %v1670
    %v1672 = vadd.f32 %v1671, 1.0
    %v1673 = vrcp.pop %v1672
    %v1674 = vmul.f32 1.0, %v1673
    %v1675 = vtanh.pop %v1665
    %v1676 = vadd.f32 %v1667, 1.0
    %v1677 = vmul.f32 %v1676, 0.5
    %v1678 = vmax.f32 %v1677, 0.0
    %v1679 = vmin.f32 %v1678, 1.0
    %1681 = vrot.lane.b32.xlu0 %v1675, 64
    %v1682 = vpop.permute.xlu0 %1681
    %v1684 = vmul.f32 %v1674, %v1682
    %v1685 = vmul.f32 %v1410, %v1684
    %1687 = vrot.lane.b32.xlu0 %v1393, 96
    %v1688 = vpop.permute.xlu0 %1687
    %v1690 = vmul.f32 %v1674, %v1688
    %1692 = vrot.lane.b32.xlu0 %v1684, 96
    %v1693 = vpop.permute.xlu0 %1692
    %v1695 = vadd.f32 %v1690, %v1693
    %v1696 = vmul.f32 %v1579, %v1695
    %1698 = vrot.lane.b32.xlu0 %v1696, 32
    %v1699 = vpop.permute.xlu0 %1698
    %v1701 = vadd.f32 %v1685, %v1699
    %v1702 = vtanh.pop %v1701
    %1704 = vrot.lane.b32.xlu0 %v1702, 32
    %v1705 = vpop.permute.xlu0 %1704
    %v1707 = vmul.f32 %v1674, %v1705
    %v1708 = vsub.f32 1.0, %v1507
    %1710 = vset.pattern.permute.xlu0 64
    %1711 = vperm.xlu0 %1710, %v1708
    %v1712 = vpop.permute.xlu0 %1711
    %v1714 = vmul.f32 %v1712, %v1562
    %1716 = vset.pattern.permute.xlu0 0
    %1717 = vperm.xlu0 %1716, %v1679
    %v1718 = vpop.permute.xlu0 %1717
    %v1720 = vmul.f32 %v1718, %v1707
    %1722 = vrot.lane.b32.xlu0 %v1714, 96
    %v1723 = vpop.permute.xlu0 %1722
    %1726 = vrot.lane.b32.xlu0 %v1720, 80
    %v1727 = vpop.permute.xlu0 %1726
    %v1729 = vsel %vm209, %v1723, %v1727
    %v1730 = vsel %vm84, %v1729, 1.0
    %v1731 = vsel %vm212, %v1730, 0.0
    %v1733 = vsel %vm86, %v1731, 0
    %1735 = vmatprep.subr.mxu0 0.0
    %1736 = vmatpush1.msra.mxu0 %v72
    %1737 = vmatprep.subr.mxu0 0.0
    %1738 = vmatpush1.msra.mxu0 %v73
    %1739 = vmatprep.subr.mxu0 0.0
    %1740 = vmatpush1.msra.mxu0 %v74
    %1741 = vmatprep.subr.mxu0 0.0
    %1742 = vmatpush1.msra.mxu0 %v75
    %1743 = vmatprep.subr.mxu0 0.0
    %1744 = vmatpush1.msra.mxu0 %v76
    %1745 = vmatprep.subr.mxu0 0.0
    %1746 = vmatpush1.msra.mxu0 %v77
    %1747 = vmatprep.subr.mxu0 0.0
    %1748 = vmatpush1.msra.mxu0 %v78
    %1749 = vmatprep.subr.mxu0 0.0
    %1750 = vmatpush1.msra.mxu0 0.0
    %1751 = vmatprep.subr.mxu0 0.0
    %1752 = vmatpush1.msra.mxu0 0.0
    %1753 = vmatprep.subr.mxu0 0.0
    %1754 = vmatpush1.msra.mxu0 0.0
    %1755 = vmatprep.subr.mxu0 0.0
    %1756 = vmatpush1.msra.mxu0 0.0
    %1757 = vmatprep.subr.mxu0 0.0
    %1758 = vmatpush1.msra.mxu0 0.0
    %1759 = vmatprep.subr.mxu0 0.0
    %1760 = vmatpush1.msra.mxu0 0.0
    %1761 = vmatprep.subr.mxu0 0.0
    %1762 = vmatpush1.msra.mxu0 0.0
    %1763 = vmatprep.subr.mxu0 0.0
    %1764 = vmatpush1.msra.mxu0 0.0
    %1765 = vmatprep.subr.mxu0 0.0
    %1766 = vmatpush1.msra.mxu0 0.0
    %1767 = vmatprep.subr.mxu0 0.0
    %1768 = vmatpush1.msra.mxu0 0.0
    %1769 = vmatprep.subr.mxu0 0.0
    %1770 = vmatpush1.msra.mxu0 0.0
    %1771 = vmatprep.subr.mxu0 0.0
    %1772 = vmatpush1.msra.mxu0 0.0
    %1773 = vmatprep.subr.mxu0 0.0
    %1774 = vmatpush1.msra.mxu0 0.0
    %1775 = vmatprep.subr.mxu0 0.0
    %1776 = vmatpush1.msra.mxu0 0.0
    %1777 = vmatprep.subr.mxu0 0.0
    %1778 = vmatpush1.msra.mxu0 0.0
    %1779 = vmatprep.subr.mxu0 0.0
    %1780 = vmatpush1.msra.mxu0 0.0
    %1781 = vmatprep.subr.mxu0 0.0
    %1782 = vmatpush1.msra.mxu0 0.0
    %1783 = vmatprep.subr.mxu0 0.0
    %1784 = vmatpush1.msra.mxu0 0.0
    %1785 = vmatprep.subr.mxu0 0.0
    %1786 = vmatpush1.msra.mxu0 0.0
    %1787 = vmatprep.subr.mxu0 0.0
    %1788 = vmatpush1.msra.mxu0 0.0
    %1789 = vmatprep.subr.mxu0 0.0
    %1790 = vmatpush1.msra.mxu0 0.0
    %1791 = vmatprep.subr.mxu0 0.0
    %1792 = vmatpush1.msra.mxu0 0.0
    %1793 = vmatprep.subr.mxu0 0.0
    %1794 = vmatpush1.msra.mxu0 0.0
    %1795 = vmatprep.subr.mxu0 0.0
    %1796 = vmatpush1.msra.mxu0 0.0
    %1797 = vmatprep.subr.mxu0 0.0
    %1798 = vmatpush1.msra.mxu0 0.0
    %1799 = vmatprep.mubr.f32.mxu0 0.0
    %1800 = vmatmul.mubr.f32.gmra.mrb[0].mxu0 %v1733
    %v1801 = vpop.f32.mrb[0].mxu0
    %v1802 = vadd.f32 0.0, %v1801
    %v1803 = vpop.f32.mrb[0].mxu0
    %1804 = vdwg.mxu0
    %v1805 = vxor.u32 %v1802, 2147483648
    %v1806 = vmul.f32 %v1805, 1.442695
    %v1807 = vpow.pop %v1806
    %v1808 = vadd.f32 %v1807, 1.0
    %v1809 = vrcp.pop %v1808
    %v1810 = vmul.f32 1.0, %v1809
    %v1811 = vtanh.pop %v1802
    %v1812 = vadd.f32 %v1802, 1.0
    %v1813 = vmul.f32 %v1812, 0.5
    %v1814 = vmax.f32 %v1813, 0.0
    %v1815 = vmin.f32 %v1814, 1.0
    %1817 = vrot.lane.b32.xlu0 %v1811, 96
    %v1818 = vpop.permute.xlu0 %1817
    %v1820 = vmul.f32 %v1810, %v1818
    %v1821 = vmul.f32 %v1566, %v1820
    %v1822 = vsub.f32 1.0, %v1679
    %1824 = vrot.lane.b32.xlu0 %v1822, 64
    %v1825 = vpop.permute.xlu0 %1824
    %v1827 = vmul.f32 %v1708, %v1825
    %1829 = vset.pattern.permute.xlu0 64
    %1830 = vperm.xlu0 %1829, %v1827
    %v1831 = vpop.permute.xlu0 %1830
    %v1833 = vmul.f32 %v1831, %v1551
    %v1834 = vadd.f32 %v1821, %v1833
    %1835 = vrot.lane.b32.xlu0 %v1679, 64
    %v1836 = vpop.permute.xlu0 %1835
    %v1838 = vmul.f32 %v1708, %v1836
    %1840 = vrot.lane.b32.xlu0 %v1551, 112
    %v1841 = vpop.permute.xlu0 %1840
    %v1843 = vmul.f32 %v1810, %v1841
    %1845 = vrot.lane.b32.xlu0 %v1820, 112
    %v1846 = vpop.permute.xlu0 %1845
    %v1848 = vadd.f32 %v1843, %v1846
    %1850 = vset.pattern.permute.xlu0 64
    %1851 = vperm.xlu0 %1850, %v1838
    %v1852 = vpop.permute.xlu0 %1851
    %v1854 = vmul.f32 %v1852, %v1848
    %1856 = vrot.lane.b32.xlu0 %v1854, 16
    %v1857 = vpop.permute.xlu0 %1856
    %v1859 = vadd.f32 %v1834, %v1857
    %v1860 = vtanh.pop %v1859
    %1862 = vrot.lane.b32.xlu0 %v1860, 16
    %v1863 = vpop.permute.xlu0 %1862
    %v1865 = vmul.f32 %v1810, %v1863
    %v1866 = vmul.f32 %v1566, %v1865
    %v1867 = vmul.f32 %v1831, %v1562
    %v1868 = vadd.f32 %v1866, %v1867
    %v1869 = vmul.f32 %v1852, %v1865
    %v1870 = vadd.f32 %v1868, %v1869
    %1872 = vset.pattern.permute.xlu0 64
    %1873 = vperm.xlu0 %1872, %v1815
    %v1874 = vpop.permute.xlu0 %1873
    %v1876 = vmul.f32 %v1870, %v1874
    %1878 = vrot.lane.b32.xlu0 %v1876, 96
    %v1879 = vpop.permute.xlu0 %1878
    %s1881 = scalar_lea.vmem [#allocation8], 20
    %1882 = vst.msk [vmem:[%s1881] sm:$0xf] %vm344, %v1879
    // Predicated region
    $region26: #{tpu_custom_call.1} parent=1 // pred_check
      _
    $region27: #{tpu_custom_call.1} parent=1 // pred_check_branch
      %1884 = sbr.rel (0) target = $region29
    $region28: #{tpu_custom_call.1} parent=1 // pred_region
      %s1886 = ssub.s32 384, 384
      %1887 = vsyncadd [#allocation4], %s1886
      %s1888 = sshll.u32 [#allocation8], 4
      %s1889 = int_to_ptr.vmem [resolvable:$true] %s1888
      %1894 = dma.vmem_to_hbm [thread:$0]  %s1889, 384, %s3, [#allocation4], 64, 64, 4
    $region29: #{tpu_custom_call.1} parent=1 // pred_fallthru
      _
    // Predicated region
    $region30: #{tpu_custom_call.1} parent=1 // pred_check
      _
    $region31: #{tpu_custom_call.1} parent=1 // pred_check_branch
      %1896 = sbr.rel (0) target = $region33
    $region32: #{tpu_custom_call.1} parent=1 // pred_region
      %1897 = dma.done [#allocation4], 384
    $region33: #{tpu_custom_call.1} parent=1 // pred_fallthru
      _
    %1898 = vsyncpa [#allocation3], 1
    %1899 = vsyncpa [#allocation6], 1
    %1900 = vsyncpa [#allocation4], 1

</llo_original>
